<compile_context>
chip_gen: v7x
topology: tpu7x:2x2x1
jax: 0.10.0
libtpu: 0.0.40
codegen_flags: <defaults>
</compile_context>

<pallas_src>
import functools

import jax
import jax.numpy as jnp
from jax import lax
from jax.experimental import pallas as pl
from jax.experimental.pallas import tpu as pltpu


# ----------------------------------------------------------------------------
# Pallas kernel: fused matmul + bias + activation, transposed / lane-dense form
# ----------------------------------------------------------------------------
_TM = 256  # M tile: multiple of 128 lanes; MXU-native width on v6e/v7x.


def _matmul_bias_act_kernel(w_ref, a_ref, bias_ref, o_ref, *, act):
    # w: (N, K) bf16 | a: (K, TM) bf16 | bias: (N, 1) f32 -> o: (N, TM) f32
    acc = jnp.dot(w_ref[...], a_ref[...], preferred_element_type=jnp.float32)
    acc = acc + bias_ref[...]                 # broadcast over the lane (M) axis
    if act == "relu":
        acc = jnp.maximum(acc, 0.0)
    elif act == "sigmoid256":
        acc = 256.0 * jax.nn.sigmoid(acc)     # EUP-side, effectively free
    o_ref[...] = acc.astype(o_ref.dtype)


def matmul_bias_act_t(w_nk, a_km, bias, act="none", tm=_TM):
    """act(w_nk @ a_km + bias); w:(N,K), a:(K,M), bias:(N,) -> (N,M) f32.

    M (thousands of output positions) sits on the lane axis so output stores
    are lane-dense; the grid tiles M (double-buffered, megacore-parallel).
    """
    N, K = w_nk.shape
    K2, M = a_km.shape
    assert K == K2
    m_pad = ((M + tm - 1) // tm) * tm
    if m_pad != M:
        a_km = jnp.pad(a_km, ((0, 0), (0, m_pad - M)))
    kernel = functools.partial(_matmul_bias_act_kernel, act=act)
    out = pl.pallas_call(
        kernel,
        out_shape=jax.ShapeDtypeStruct((N, m_pad), jnp.float32),
        grid=(m_pad // tm,),
        in_specs=[
            pl.BlockSpec((N, K), lambda i: (0, 0)),    # weights: VMEM-resident
            pl.BlockSpec((K, tm), lambda i: (0, i)),   # activations: tiled M
            pl.BlockSpec((N, 1), lambda i: (0, 0)),    # bias: resident
        ],
        out_specs=pl.BlockSpec((N, tm), lambda i: (0, i)),
        compiler_params=pltpu.CompilerParams(
            dimension_semantics=("parallel",),
            vmem_limit_bytes=32 * 1024 * 1024),
    )(w_nk.astype(jnp.bfloat16), a_km.astype(jnp.bfloat16),
      bias.reshape(N, 1).astype(jnp.float32))
    return out[:, :M]


# ----------------------------------------------------------------------------
# Conv wrappers. Internal activation layout is channels-first (C, B, D, H, W)
# so the (K, M) patch matrix and the (Cout, M) matmul result need no transposes.
# ----------------------------------------------------------------------------
def conv3d_cn(x, w, b, stride, padding, act="none"):
    """x:(Cin,B,D,H,W), w:(Cout,Cin,kt,kh,kw), b:(Cout,) -> (Cout,B,Do,Ho,Wo)."""
    Cin, B, D, H, W = x.shape
    Cout, _, kt, kh, kw = w.shape
    st, sh, sw = stride
    pt, ph, pw = padding
    x = x.astype(jnp.bfloat16)           # halve HBM traffic of the patch glue
    xp = jnp.pad(x, ((0, 0), (0, 0), (pt, pt), (ph, ph), (pw, pw)))
    Do = (D + 2 * pt - kt) // st + 1
    Ho = (H + 2 * ph - kh) // sh + 1
    Wo = (W + 2 * pw - kw) // sw + 1
    taps = []
    for a in range(kt):
        for bb in range(kh):
            for c in range(kw):
                taps.append(
                    xp[:, :, a:a + st * Do:st, bb:bb + sh * Ho:sh, c:c + sw * Wo:sw])
    # (Cin, taps, B, Do, Ho, Wo): K ordering (Cin, kt, kh, kw) matches
    # w.reshape(Cout, K); M ordering (B, Do, Ho, Wo) -> no transposes.
    patches = jnp.stack(taps, axis=1)
    K = Cin * kt * kh * kw
    M = B * Do * Ho * Wo
    a_km = patches.reshape(K, M)
    w_nk = w.reshape(Cout, K)
    out = matmul_bias_act_t(w_nk, a_km, b, act=act)   # (Cout, M) f32
    return out.reshape(Cout, B, Do, Ho, Wo)


def conv_transpose3d_cn(x, w, b, stride, padding, output_padding, act="none"):
    """PyTorch ConvTranspose3d. x:(Cin,B,D,H,W), w:(Cin,Cout,kt,kh,kw).

    output_padding MUST be static Python ints (derived from args, not params).
    """
    Cin, B, D, H, W = x.shape
    kt, kh, kw = w.shape[2:]
    st, sh, sw = stride
    pt, ph, pw = padding
    opt, oph, opw = output_padding
    x = x.astype(jnp.bfloat16)
    # zero-dilate the input by the stride
    Dd, Hd, Wd = (D - 1) * st + 1, (H - 1) * sh + 1, (W - 1) * sw + 1
    xd = jnp.zeros((Cin, B, Dd, Hd, Wd), x.dtype).at[:, :, ::st, ::sh, ::sw].set(x)
    # pad with (k-1-p) lo / (k-1-p+output_padding) hi
    qd, qh, qw = kt - 1 - pt, kh - 1 - ph, kw - 1 - pw
    assert qd >= 0 and qh >= 0 and qw >= 0
    xp = jnp.pad(xd, ((0, 0), (0, 0), (qd, qd + opt), (qh, qh + oph), (qw, qw + opw)))
    # equivalent stride-1 conv weight: spatial flip + channel swap
    w_conv = jnp.flip(w, axis=(2, 3, 4)).transpose(1, 0, 2, 3, 4)
    # TODO(synk): sub-pixel decomposition to skip the ~7/8 structural-zero MACs.
    return conv3d_cn(xp, w_conv, b, (1, 1, 1), (0, 0, 0), act=act)


def conv2d_1x1_sigmoid256(x, w, b):
    """x:(B,C,H,W), w:(Cout,C,1,1) -> 256*sigmoid(conv1x1(x)), shape (B,Cout,H,W)."""
    B, C, H, W = x.shape
    Cout = w.shape[0]
    a_km = x.transpose(1, 0, 2, 3).reshape(C, B * H * W)
    w_nk = w.reshape(Cout, C)
    out = matmul_bias_act_t(w_nk, a_km, b, act="sigmoid256")   # (Cout, M)
    return out.reshape(Cout, B, H, W).transpose(1, 0, 2, 3)


# ----------------------------------------------------------------------------
# FCUp_Down3D forward (Up_Down_Chain)
# ----------------------------------------------------------------------------
def _up_out_pads(args):
    """Static output_padding_t for each Up module, in forward order."""
    pads = []
    for z in range(args.depth - 1, -1, -1):        # Up(depth=z), forward order
        if z == 0:
            op = 0 if args.in_no % 2 == 0 else 1
        else:
            op = 0 if (args.in_no / 2 ** z) % 2 == 0 else 1
        pads.append(op)
    return pads


def double_conv(x, p, pad3):
    # TODO(synk): fuse both convs into one pallas_call keeping the intermediate
    # in VMEM (needs in-kernel tap accumulation first).
    x = conv3d_cn(x, p["w1"], p["b1"], (2, 2, 2), pad3, act="none")
    x = conv3d_cn(x, p["w2"], p["b2"], (1, 1, 1), pad3, act="relu")
    return x


def fc_updown3d_forward(params, x, args):
    pad3 = (args.padding_t, args.padding, args.padding)
    xc = x[None]                     # (1, B, in_no, H, W) : channels-first (CN DHW)
    # down chain
    xc = double_conv(xc, params["down"][0], pad3)
    residues = []
    for dp in params["down"][1:]:
        xc = double_conv(xc, dp, pad3)
        residues.insert(0, xc)
    # up chain: convT(x1) + convT(x2) == convT(x1 + x2) with doubled bias
    up_pads = _up_out_pads(args)     # static Python ints (fixes tracer-in-pad bug)
    for idx, up in enumerate(params["up"]):
        op3 = (up_pads[idx], 1, 1)
        xc = conv_transpose3d_cn(xc + residues[idx], up["w"], 2.0 * up["b"],
                                 (2, 2, 2), pad3, op3)
    # OutConv: ConvTranspose3d -> squeeze channel -> 1x1 Conv2d -> sigmoid_256
    oc = params["out"]
    op3 = (int(args.in_no % 2 == 0), 1, 1)
    xc = conv_transpose3d_cn(xc, oc["up_w"], oc["up_b"], (2, 2, 2), pad3, op3)
    x2d = jnp.squeeze(xc, axis=0)    # (B, in_no, H, W)
    return conv2d_1x1_sigmoid256(x2d, oc["w"], oc["b"])


# ----------------------------------------------------------------------------
# Pure-JAX reference (lax convs, original UNFUSED Up structure).  Conv operands
# are rounded to bf16 exactly like the Pallas path so the check stays tight.
# ----------------------------------------------------------------------------
def _ref_conv3d(x, w, b, stride, pad):
    y = lax.conv_general_dilated(
        x.astype(jnp.bfloat16), w.astype(jnp.bfloat16), stride,
        [(p, p) for p in pad],
        dimension_numbers=("NCDHW", "OIDHW", "NCDHW"),
        preferred_element_type=jnp.float32)
    return y + b.reshape(1, -1, 1, 1, 1)


def _ref_conv_transpose3d(x, w, b, stride, pad, out_pad):
    ks = w.shape[2:]
    w_conv = jnp.flip(w, axis=(2, 3, 4)).transpose(1, 0, 2, 3, 4)
    pads = [(k - 1 - p, k - 1 - p + op) for k, p, op in zip(ks, pad, out_pad)]
    y = lax.conv_general_dilated(
        x.astype(jnp.bfloat16), w_conv.astype(jnp.bfloat16), (1, 1, 1), pads,
        lhs_dilation=stride,
        dimension_numbers=("NCDHW", "OIDHW", "NCDHW"),
        preferred_element_type=jnp.float32)
    return y + b.reshape(1, -1, 1, 1, 1)


def ref_forward(params, x, args):
    pad3 = (args.padding_t, args.padding, args.padding)
    x = x[:, None]
    d0 = params["down"][0]
    x = _ref_conv3d(x, d0["w1"], d0["b1"], (2, 2, 2), pad3)
    x = jnp.maximum(_ref_conv3d(x, d0["w2"], d0["b2"], (1, 1, 1), pad3), 0.0)
    residues = []
    for dp in params["down"][1:]:
        x = _ref_conv3d(x, dp["w1"], dp["b1"], (2, 2, 2), pad3)
        x = jnp.maximum(_ref_conv3d(x, dp["w2"], dp["b2"], (1, 1, 1), pad3), 0.0)
        residues.insert(0, x)
    up_pads = _up_out_pads(args)
    for idx, up in enumerate(params["up"]):
        op3 = (up_pads[idx], 1, 1)
        x1 = _ref_conv_transpose3d(x, up["w"], up["b"], (2, 2, 2), pad3, op3)
        x2 = _ref_conv_transpose3d(residues[idx], up["w"], up["b"], (2, 2, 2), pad3, op3)
        x = x2 + x1
    oc = params["out"]
    op3 = (int(args.in_no % 2 == 0), 1, 1)
    x = _ref_conv_transpose3d(x, oc["up_w"], oc["up_b"], (2, 2, 2), pad3, op3)
    x = jnp.squeeze(x, axis=1)
    xb = x.astype(jnp.bfloat16).astype(jnp.float32)
    wb = oc["w"][:, :, 0, 0].astype(jnp.bfloat16).astype(jnp.float32)
    y = jnp.einsum("bchw,oc->bohw", xb, wb) + oc["b"].reshape(1, -1, 1, 1)
    return 256.0 * jax.nn.sigmoid(y)


# ----------------------------------------------------------------------------
# Deterministic parameter init (PyTorch-default-style uniform bounds).
# Note: no non-array leaves in the params pytree (jit-safe).
# ----------------------------------------------------------------------------
def init_params(key, args):
    start_channels = 1  # img_type == 'greyscale'
    cf = args.channel_factor
    k3 = (args.krnl_size_t, args.krnl_size, args.krnl_size)
    kvol = k3[0] * k3[1] * k3[2]
    keys = iter(jax.random.split(key, 128))

    def u(shape, fan):
        bound = 1.0 / float(fan) ** 0.5
        return jax.random.uniform(next(keys), shape, jnp.float32, -bound, bound)

    def conv3d_p(cin, cout):
        fan = cin * kvol
        return {"w": u((cout, cin) + k3, fan), "b": u((cout,), fan)}

    def convT3d_p(cin, cout):
        fan = cout * kvol
        return {"w": u((cin, cout) + k3, fan), "b": u((cout,), fan)}

    down = []
    chan_pairs = [(start_channels, cf)] + [(2 ** z * cf, 2 ** (z + 1) * cf)
                                           for z in range(args.depth)]
    for cin, cout in chan_pairs:
        c1, c2 = conv3d_p(cin, cout), conv3d_p(cout, cout)
        down.append({"w1": c1["w"], "b1": c1["b"], "w2": c2["w"], "b2": c2["b"]})

    up = []
    for z in range(args.depth - 1, -1, -1):  # forward order of the Up modules
        p = convT3d_p(2 ** (z + 1) * cf, 2 ** z * cf)
        up.append({"w": p["w"], "b": p["b"]})

    ocu = convT3d_p(cf, start_channels)
    fan2d = args.in_no
    out = {"up_w": ocu["w"], "up_b": ocu["b"],
           "w": u((args.out_no, args.in_no, 1, 1), fan2d),
           "b": u((args.out_no,), fan2d)}
    return {"down": down, "up": up, "out": out}


# ----------------------------------------------------------------------------
class Args:
    img_type = "greyscale"
    channel_factor = 4
    depth = 1
    krnl_size = 3
    krnl_size_t = 3
    padding = 1
    padding_t = 1
    in_no = 7       # chosen so the U-net round-trips the temporal dim
    out_no = 1


if __name__ == "__main__":
    args = Args()
    key = jax.random.PRNGKey(0)
    pkey, xkey = jax.random.split(key)
    params = init_params(pkey, args)
    x = jax.random.normal(xkey, (2, args.in_no, 16, 16), jnp.float32)

    fwd = jax.jit(lambda p, xx: fc_updown3d_forward(p, xx, args))
    out = jax.block_until_ready(fwd(params, x))
    assert out.shape == (2, args.out_no, 16, 16), out.shape

    ref = jax.block_until_ready(ref_forward(params, x, args))
    max_err = float(jnp.max(jnp.abs(out - ref)))
    # bf16 operands + the Up-module linearity fold reassociate rounding, so a
    # small tolerance on the 0..256-scaled output is expected.
    assert max_err < 1.5, f"max abs error vs reference too large: {max_err}"

    print("KERNEL_OK")
</pallas_src>

<mosaic_0001>
module attributes {stable_mosaic.version = 11 : i64} {
  func.func @_matmul_bias_act_kernel(%arg0: i32, %arg1: memref<4x27xbf16, #tpu.memory_space<vmem>>, %arg2: memref<27x256xbf16, #tpu.memory_space<vmem>>, %arg3: memref<4x1xf32, #tpu.memory_space<vmem>>, %arg4: memref<4x256xf32, #tpu.memory_space<vmem>>) attributes {dimension_semantics = [#tpu.dimension_semantics<parallel>], iteration_bounds = array<i64: 2>, scalar_prefetch = 0 : i64, scratch_operands = 0 : i64, tpu.core_type = #tpu.core_type<tc>, window_params = [{pipeline_mode = #tpu.pipeline_mode<synchronous>, transform_indices = @transform_0, window_bounds = array<i64: 4, 27>}, {transform_indices = @transform_1, window_bounds = array<i64: 27, 256>}, {pipeline_mode = #tpu.pipeline_mode<synchronous>, transform_indices = @transform_2, window_bounds = array<i64: 4, 1>}, {transform_indices = @transform_3, window_bounds = array<i64: 4, 256>}]} {
    %c0 = arith.constant 0 : index
    %c0_0 = arith.constant 0 : index
    %0 = vector.load %arg1[%c0, %c0_0] : memref<4x27xbf16, #tpu.memory_space<vmem>>, vector<4x27xbf16>
    %c0_1 = arith.constant 0 : index
    %c0_2 = arith.constant 0 : index
    %1 = vector.load %arg2[%c0_1, %c0_2] : memref<27x256xbf16, #tpu.memory_space<vmem>>, vector<27x256xbf16>
    %cst = arith.constant dense<0.000000e+00> : vector<4x256xf32>
    %2 = tpu.matmul %0, %1, %cst {dimension_numbers = #tpu.dot_dimension_numbers<[1], [0], [0], [1], [0, 0, 1, 1], [], []>} : vector<4x27xbf16>, vector<27x256xbf16>, vector<4x256xf32> -> vector<4x256xf32>
    %c0_3 = arith.constant 0 : index
    %c0_4 = arith.constant 0 : index
    %3 = vector.load %arg3[%c0_3, %c0_4] : memref<4x1xf32, #tpu.memory_space<vmem>>, vector<4x1xf32>
    %4 = vector.broadcast %3 : vector<4x1xf32> to vector<4x256xf32>
    %5 = arith.addf %2, %4 : vector<4x256xf32>
    %c0_5 = arith.constant 0 : index
    %c0_6 = arith.constant 0 : index
    %6 = vector.load %arg4[%c0_5, %c0_6] : memref<4x256xf32, #tpu.memory_space<vmem>>, vector<4x256xf32>
    tpu.vector_store %arg4[%c0_5, %c0_6], %5 {strides = array<i32>} : memref<4x256xf32, #tpu.memory_space<vmem>>, vector<4x256xf32>,
    return
  }
  func.func @transform_0(%arg0: i32) -> (i32, i32) {
    %c0_i32 = arith.constant 0 : i32
    %c0_i32_0 = arith.constant 0 : i32
    %c0_i32_1 = arith.constant 0 : i32
    return %c0_i32, %c0_i32_0 : i32, i32
  }
  func.func @transform_1(%arg0: i32) -> (i32, i32) {
    %c0_i32 = arith.constant 0 : i32
    %c0_i32_0 = arith.constant 0 : i32
    return %c0_i32, %arg0 : i32, i32
  }
  func.func @transform_2(%arg0: i32) -> (i32, i32) {
    %c0_i32 = arith.constant 0 : i32
    %c0_i32_0 = arith.constant 0 : i32
    %c0_i32_1 = arith.constant 0 : i32
    return %c0_i32, %c0_i32_0 : i32, i32
  }
  func.func @transform_3(%arg0: i32) -> (i32, i32) {
    %c0_i32 = arith.constant 0 : i32
    %c0_i32_0 = arith.constant 0 : i32
    return %c0_i32, %arg0 : i32, i32
  }
}

module attributes {stable_mosaic.version = 11 : i64} {
  func.func @_matmul_bias_act_kernel(%arg0: i32, %arg1: memref<4x108xbf16, #tpu.memory_space<vmem>>, %arg2: memref<108x256xbf16, #tpu.memory_space<vmem>>, %arg3: memref<4x1xf32, #tpu.memory_space<vmem>>, %arg4: memref<4x256xf32, #tpu.memory_space<vmem>>) attributes {dimension_semantics = [#tpu.dimension_semantics<parallel>], iteration_bounds = array<i64: 2>, scalar_prefetch = 0 : i64, scratch_operands = 0 : i64, tpu.core_type = #tpu.core_type<tc>, window_params = [{pipeline_mode = #tpu.pipeline_mode<synchronous>, transform_indices = @transform_0, window_bounds = array<i64: 4, 108>}, {transform_indices = @transform_1, window_bounds = array<i64: 108, 256>}, {pipeline_mode = #tpu.pipeline_mode<synchronous>, transform_indices = @transform_2, window_bounds = array<i64: 4, 1>}, {transform_indices = @transform_3, window_bounds = array<i64: 4, 256>}]} {
    %c0 = arith.constant 0 : index
    %c0_0 = arith.constant 0 : index
    %0 = vector.load %arg1[%c0, %c0_0] : memref<4x108xbf16, #tpu.memory_space<vmem>>, vector<4x108xbf16>
    %c0_1 = arith.constant 0 : index
    %c0_2 = arith.constant 0 : index
    %1 = vector.load %arg2[%c0_1, %c0_2] : memref<108x256xbf16, #tpu.memory_space<vmem>>, vector<108x256xbf16>
    %cst = arith.constant dense<0.000000e+00> : vector<4x256xf32>
    %2 = tpu.matmul %0, %1, %cst {dimension_numbers = #tpu.dot_dimension_numbers<[1], [0], [0], [1], [0, 0, 1, 1], [], []>} : vector<4x108xbf16>, vector<108x256xbf16>, vector<4x256xf32> -> vector<4x256xf32>
    %c0_3 = arith.constant 0 : index
    %c0_4 = arith.constant 0 : index
    %3 = vector.load %arg3[%c0_3, %c0_4] : memref<4x1xf32, #tpu.memory_space<vmem>>, vector<4x1xf32>
    %4 = vector.broadcast %3 : vector<4x1xf32> to vector<4x256xf32>
    %5 = arith.addf %2, %4 : vector<4x256xf32>
    %cst_5 = arith.constant 0.000000e+00 : f32
    %6 = vector.broadcast %cst_5 : f32 to vector<4x256xf32>
    %7 = arith.maximumf %5, %6 : vector<4x256xf32>
    %c0_6 = arith.constant 0 : index
    %c0_7 = arith.constant 0 : index
    %8 = vector.load %arg4[%c0_6, %c0_7] : memref<4x256xf32, #tpu.memory_space<vmem>>, vector<4x256xf32>
    tpu.vector_store %arg4[%c0_6, %c0_7], %7 {strides = array<i32>} : memref<4x256xf32, #tpu.memory_space<vmem>>, vector<4x256xf32>,
    return
  }
  func.func @transform_0(%arg0: i32) -> (i32, i32) {
    %c0_i32 = arith.constant 0 : i32
    %c0_i32_0 = arith.constant 0 : i32
    %c0_i32_1 = arith.constant 0 : i32
    return %c0_i32, %c0_i32_0 : i32, i32
  }
  func.func @transform_1(%arg0: i32) -> (i32, i32) {
    %c0_i32 = arith.constant 0 : i32
    %c0_i32_0 = arith.constant 0 : i32
    return %c0_i32, %arg0 : i32, i32
  }
  func.func @transform_2(%arg0: i32) -> (i32, i32) {
    %c0_i32 = arith.constant 0 : i32
    %c0_i32_0 = arith.constant 0 : i32
    %c0_i32_1 = arith.constant 0 : i32
    return %c0_i32, %c0_i32_0 : i32, i32
  }
  func.func @transform_3(%arg0: i32) -> (i32, i32) {
    %c0_i32 = arith.constant 0 : i32
    %c0_i32_0 = arith.constant 0 : i32
    return %c0_i32, %arg0 : i32, i32
  }
}

module attributes {stable_mosaic.version = 11 : i64} {
  func.func @_matmul_bias_act_kernel(%arg0: i32, %arg1: memref<8x108xbf16, #tpu.memory_space<vmem>>, %arg2: memref<108x256xbf16, #tpu.memory_space<vmem>>, %arg3: memref<8x1xf32, #tpu.memory_space<vmem>>, %arg4: memref<8x256xf32, #tpu.memory_space<vmem>>) attributes {dimension_semantics = [#tpu.dimension_semantics<parallel>], iteration_bounds = array<i64: 1>, scalar_prefetch = 0 : i64, scratch_operands = 0 : i64, tpu.core_type = #tpu.core_type<tc>, window_params = [{pipeline_mode = #tpu.pipeline_mode<synchronous>, transform_indices = @transform_0, window_bounds = array<i64: 8, 108>}, {transform_indices = @transform_1, window_bounds = array<i64: 108, 256>}, {pipeline_mode = #tpu.pipeline_mode<synchronous>, transform_indices = @transform_2, window_bounds = array<i64: 8, 1>}, {transform_indices = @transform_3, window_bounds = array<i64: 8, 256>}]} {
    %c0 = arith.constant 0 : index
    %c0_0 = arith.constant 0 : index
    %0 = vector.load %arg1[%c0, %c0_0] : memref<8x108xbf16, #tpu.memory_space<vmem>>, vector<8x108xbf16>
    %c0_1 = arith.constant 0 : index
    %c0_2 = arith.constant 0 : index
    %1 = vector.load %arg2[%c0_1, %c0_2] : memref<108x256xbf16, #tpu.memory_space<vmem>>, vector<108x256xbf16>
    %cst = arith.constant dense<0.000000e+00> : vector<8x256xf32>
    %2 = tpu.matmul %0, %1, %cst {dimension_numbers = #tpu.dot_dimension_numbers<[1], [0], [0], [1], [0, 0, 1, 1], [], []>} : vector<8x108xbf16>, vector<108x256xbf16>, vector<8x256xf32> -> vector<8x256xf32>
    %c0_3 = arith.constant 0 : index
    %c0_4 = arith.constant 0 : index
    %3 = vector.load %arg3[%c0_3, %c0_4] : memref<8x1xf32, #tpu.memory_space<vmem>>, vector<8x1xf32>
    %4 = vector.broadcast %3 : vector<8x1xf32> to vector<8x256xf32>
    %5 = arith.addf %2, %4 : vector<8x256xf32>
    %c0_5 = arith.constant 0 : index
    %c0_6 = arith.constant 0 : index
    %6 = vector.load %arg4[%c0_5, %c0_6] : memref<8x256xf32, #tpu.memory_space<vmem>>, vector<8x256xf32>
    tpu.vector_store %arg4[%c0_5, %c0_6], %5 {strides = array<i32>} : memref<8x256xf32, #tpu.memory_space<vmem>>, vector<8x256xf32>,
    return
  }
  func.func @transform_0(%arg0: i32) -> (i32, i32) {
    %c0_i32 = arith.constant 0 : i32
    %c0_i32_0 = arith.constant 0 : i32
    %c0_i32_1 = arith.constant 0 : i32
    return %c0_i32, %c0_i32_0 : i32, i32
  }
  func.func @transform_1(%arg0: i32) -> (i32, i32) {
    %c0_i32 = arith.constant 0 : i32
    %c0_i32_0 = arith.constant 0 : i32
    return %c0_i32, %arg0 : i32, i32
  }
  func.func @transform_2(%arg0: i32) -> (i32, i32) {
    %c0_i32 = arith.constant 0 : i32
    %c0_i32_0 = arith.constant 0 : i32
    %c0_i32_1 = arith.constant 0 : i32
    return %c0_i32, %c0_i32_0 : i32, i32
  }
  func.func @transform_3(%arg0: i32) -> (i32, i32) {
    %c0_i32 = arith.constant 0 : i32
    %c0_i32_0 = arith.constant 0 : i32
    return %c0_i32, %arg0 : i32, i32
  }
}

module attributes {stable_mosaic.version = 11 : i64} {
  func.func @_matmul_bias_act_kernel(%arg0: i32, %arg1: memref<8x216xbf16, #tpu.memory_space<vmem>>, %arg2: memref<216x256xbf16, #tpu.memory_space<vmem>>, %arg3: memref<8x1xf32, #tpu.memory_space<vmem>>, %arg4: memref<8x256xf32, #tpu.memory_space<vmem>>) attributes {dimension_semantics = [#tpu.dimension_semantics<parallel>], iteration_bounds = array<i64: 1>, scalar_prefetch = 0 : i64, scratch_operands = 0 : i64, tpu.core_type = #tpu.core_type<tc>, window_params = [{pipeline_mode = #tpu.pipeline_mode<synchronous>, transform_indices = @transform_0, window_bounds = array<i64: 8, 216>}, {transform_indices = @transform_1, window_bounds = array<i64: 216, 256>}, {pipeline_mode = #tpu.pipeline_mode<synchronous>, transform_indices = @transform_2, window_bounds = array<i64: 8, 1>}, {transform_indices = @transform_3, window_bounds = array<i64: 8, 256>}]} {
    %c0 = arith.constant 0 : index
    %c0_0 = arith.constant 0 : index
    %0 = vector.load %arg1[%c0, %c0_0] : memref<8x216xbf16, #tpu.memory_space<vmem>>, vector<8x216xbf16>
    %c0_1 = arith.constant 0 : index
    %c0_2 = arith.constant 0 : index
    %1 = vector.load %arg2[%c0_1, %c0_2] : memref<216x256xbf16, #tpu.memory_space<vmem>>, vector<216x256xbf16>
    %cst = arith.constant dense<0.000000e+00> : vector<8x256xf32>
    %2 = tpu.matmul %0, %1, %cst {dimension_numbers = #tpu.dot_dimension_numbers<[1], [0], [0], [1], [0, 0, 1, 1], [], []>} : vector<8x216xbf16>, vector<216x256xbf16>, vector<8x256xf32> -> vector<8x256xf32>
    %c0_3 = arith.constant 0 : index
    %c0_4 = arith.constant 0 : index
    %3 = vector.load %arg3[%c0_3, %c0_4] : memref<8x1xf32, #tpu.memory_space<vmem>>, vector<8x1xf32>
    %4 = vector.broadcast %3 : vector<8x1xf32> to vector<8x256xf32>
    %5 = arith.addf %2, %4 : vector<8x256xf32>
    %cst_5 = arith.constant 0.000000e+00 : f32
    %6 = vector.broadcast %cst_5 : f32 to vector<8x256xf32>
    %7 = arith.maximumf %5, %6 : vector<8x256xf32>
    %c0_6 = arith.constant 0 : index
    %c0_7 = arith.constant 0 : index
    %8 = vector.load %arg4[%c0_6, %c0_7] : memref<8x256xf32, #tpu.memory_space<vmem>>, vector<8x256xf32>
    tpu.vector_store %arg4[%c0_6, %c0_7], %7 {strides = array<i32>} : memref<8x256xf32, #tpu.memory_space<vmem>>, vector<8x256xf32>,
    return
  }
  func.func @transform_0(%arg0: i32) -> (i32, i32) {
    %c0_i32 = arith.constant 0 : i32
    %c0_i32_0 = arith.constant 0 : i32
    %c0_i32_1 = arith.constant 0 : i32
    return %c0_i32, %c0_i32_0 : i32, i32
  }
  func.func @transform_1(%arg0: i32) -> (i32, i32) {
    %c0_i32 = arith.constant 0 : i32
    %c0_i32_0 = arith.constant 0 : i32
    return %c0_i32, %arg0 : i32, i32
  }
  func.func @transform_2(%arg0: i32) -> (i32, i32) {
    %c0_i32 = arith.constant 0 : i32
    %c0_i32_0 = arith.constant 0 : i32
    %c0_i32_1 = arith.constant 0 : i32
    return %c0_i32, %c0_i32_0 : i32, i32
  }
  func.func @transform_3(%arg0: i32) -> (i32, i32) {
    %c0_i32 = arith.constant 0 : i32
    %c0_i32_0 = arith.constant 0 : i32
    return %c0_i32, %arg0 : i32, i32
  }
}

module attributes {stable_mosaic.version = 11 : i64} {
  func.func @_matmul_bias_act_kernel(%arg0: i32, %arg1: memref<4x216xbf16, #tpu.memory_space<vmem>>, %arg2: memref<216x256xbf16, #tpu.memory_space<vmem>>, %arg3: memref<4x1xf32, #tpu.memory_space<vmem>>, %arg4: memref<4x256xf32, #tpu.memory_space<vmem>>) attributes {dimension_semantics = [#tpu.dimension_semantics<parallel>], iteration_bounds = array<i64: 2>, scalar_prefetch = 0 : i64, scratch_operands = 0 : i64, tpu.core_type = #tpu.core_type<tc>, window_params = [{pipeline_mode = #tpu.pipeline_mode<synchronous>, transform_indices = @transform_0, window_bounds = array<i64: 4, 216>}, {transform_indices = @transform_1, window_bounds = array<i64: 216, 256>}, {pipeline_mode = #tpu.pipeline_mode<synchronous>, transform_indices = @transform_2, window_bounds = array<i64: 4, 1>}, {transform_indices = @transform_3, window_bounds = array<i64: 4, 256>}]} {
    %c0 = arith.constant 0 : index
    %c0_0 = arith.constant 0 : index
    %0 = vector.load %arg1[%c0, %c0_0] : memref<4x216xbf16, #tpu.memory_space<vmem>>, vector<4x216xbf16>
    %c0_1 = arith.constant 0 : index
    %c0_2 = arith.constant 0 : index
    %1 = vector.load %arg2[%c0_1, %c0_2] : memref<216x256xbf16, #tpu.memory_space<vmem>>, vector<216x256xbf16>
    %cst = arith.constant dense<0.000000e+00> : vector<4x256xf32>
    %2 = tpu.matmul %0, %1, %cst {dimension_numbers = #tpu.dot_dimension_numbers<[1], [0], [0], [1], [0, 0, 1, 1], [], []>} : vector<4x216xbf16>, vector<216x256xbf16>, vector<4x256xf32> -> vector<4x256xf32>
    %c0_3 = arith.constant 0 : index
    %c0_4 = arith.constant 0 : index
    %3 = vector.load %arg3[%c0_3, %c0_4] : memref<4x1xf32, #tpu.memory_space<vmem>>, vector<4x1xf32>
    %4 = vector.broadcast %3 : vector<4x1xf32> to vector<4x256xf32>
    %5 = arith.addf %2, %4 : vector<4x256xf32>
    %c0_5 = arith.constant 0 : index
    %c0_6 = arith.constant 0 : index
    %6 = vector.load %arg4[%c0_5, %c0_6] : memref<4x256xf32, #tpu.memory_space<vmem>>, vector<4x256xf32>
    tpu.vector_store %arg4[%c0_5, %c0_6], %5 {strides = array<i32>} : memref<4x256xf32, #tpu.memory_space<vmem>>, vector<4x256xf32>,
    return
  }
  func.func @transform_0(%arg0: i32) -> (i32, i32) {
    %c0_i32 = arith.constant 0 : i32
    %c0_i32_0 = arith.constant 0 : i32
    %c0_i32_1 = arith.constant 0 : i32
    return %c0_i32, %c0_i32_0 : i32, i32
  }
  func.func @transform_1(%arg0: i32) -> (i32, i32) {
    %c0_i32 = arith.constant 0 : i32
    %c0_i32_0 = arith.constant 0 : i32
    return %c0_i32, %arg0 : i32, i32
  }
  func.func @transform_2(%arg0: i32) -> (i32, i32) {
    %c0_i32 = arith.constant 0 : i32
    %c0_i32_0 = arith.constant 0 : i32
    %c0_i32_1 = arith.constant 0 : i32
    return %c0_i32, %c0_i32_0 : i32, i32
  }
  func.func @transform_3(%arg0: i32) -> (i32, i32) {
    %c0_i32 = arith.constant 0 : i32
    %c0_i32_0 = arith.constant 0 : i32
    return %c0_i32, %arg0 : i32, i32
  }
}

module attributes {stable_mosaic.version = 11 : i64} {
  func.func @_matmul_bias_act_kernel(%arg0: i32, %arg1: memref<1x108xbf16, #tpu.memory_space<vmem>>, %arg2: memref<108x256xbf16, #tpu.memory_space<vmem>>, %arg3: memref<1x1xf32, #tpu.memory_space<vmem>>, %arg4: memref<1x256xf32, #tpu.memory_space<vmem>>) attributes {dimension_semantics = [#tpu.dimension_semantics<parallel>], iteration_bounds = array<i64: 14>, scalar_prefetch = 0 : i64, scratch_operands = 0 : i64, tpu.core_type = #tpu.core_type<tc>, window_params = [{pipeline_mode = #tpu.pipeline_mode<synchronous>, transform_indices = @transform_0, window_bounds = array<i64: 1, 108>}, {transform_indices = @transform_1, window_bounds = array<i64: 108, 256>}, {pipeline_mode = #tpu.pipeline_mode<synchronous>, transform_indices = @transform_2, window_bounds = array<i64: 1, 1>}, {transform_indices = @transform_3, window_bounds = array<i64: 1, 256>}]} {
    %c0 = arith.constant 0 : index
    %c0_0 = arith.constant 0 : index
    %0 = vector.load %arg1[%c0, %c0_0] : memref<1x108xbf16, #tpu.memory_space<vmem>>, vector<1x108xbf16>
    %c0_1 = arith.constant 0 : index
    %c0_2 = arith.constant 0 : index
    %1 = vector.load %arg2[%c0_1, %c0_2] : memref<108x256xbf16, #tpu.memory_space<vmem>>, vector<108x256xbf16>
    %cst = arith.constant dense<0.000000e+00> : vector<1x256xf32>
    %2 = tpu.matmul %0, %1, %cst {dimension_numbers = #tpu.dot_dimension_numbers<[1], [0], [0], [1], [0, 0, 1, 1], [], []>} : vector<1x108xbf16>, vector<108x256xbf16>, vector<1x256xf32> -> vector<1x256xf32>
    %c0_3 = arith.constant 0 : index
    %c0_4 = arith.constant 0 : index
    %3 = vector.load %arg3[%c0_3, %c0_4] : memref<1x1xf32, #tpu.memory_space<vmem>>, vector<1x1xf32>
    %4 = vector.broadcast %3 : vector<1x1xf32> to vector<1x256xf32>
    %5 = arith.addf %2, %4 : vector<1x256xf32>
    %c0_5 = arith.constant 0 : index
    %c0_6 = arith.constant 0 : index
    %6 = vector.load %arg4[%c0_5, %c0_6] : memref<1x256xf32, #tpu.memory_space<vmem>>, vector<1x256xf32>
    tpu.vector_store %arg4[%c0_5, %c0_6], %5 {strides = array<i32>} : memref<1x256xf32, #tpu.memory_space<vmem>>, vector<1x256xf32>,
    return
  }
  func.func @transform_0(%arg0: i32) -> (i32, i32) {
    %c0_i32 = arith.constant 0 : i32
    %c0_i32_0 = arith.constant 0 : i32
    %c0_i32_1 = arith.constant 0 : i32
    return %c0_i32, %c0_i32_0 : i32, i32
  }
  func.func @transform_1(%arg0: i32) -> (i32, i32) {
    %c0_i32 = arith.constant 0 : i32
    %c0_i32_0 = arith.constant 0 : i32
    return %c0_i32, %arg0 : i32, i32
  }
  func.func @transform_2(%arg0: i32) -> (i32, i32) {
    %c0_i32 = arith.constant 0 : i32
    %c0_i32_0 = arith.constant 0 : i32
    %c0_i32_1 = arith.constant 0 : i32
    return %c0_i32, %c0_i32_0 : i32, i32
  }
  func.func @transform_3(%arg0: i32) -> (i32, i32) {
    %c0_i32 = arith.constant 0 : i32
    %c0_i32_0 = arith.constant 0 : i32
    return %c0_i32, %arg0 : i32, i32
  }
}

module attributes {stable_mosaic.version = 11 : i64} {
  func.func @_matmul_bias_act_kernel(%arg0: i32, %arg1: memref<1x7xbf16, #tpu.memory_space<vmem>>, %arg2: memref<7x256xbf16, #tpu.memory_space<vmem>>, %arg3: memref<1x1xf32, #tpu.memory_space<vmem>>, %arg4: memref<1x256xf32, #tpu.memory_space<vmem>>) attributes {dimension_semantics = [#tpu.dimension_semantics<parallel>], iteration_bounds = array<i64: 2>, scalar_prefetch = 0 : i64, scratch_operands = 0 : i64, tpu.core_type = #tpu.core_type<tc>, window_params = [{pipeline_mode = #tpu.pipeline_mode<synchronous>, transform_indices = @transform_0, window_bounds = array<i64: 1, 7>}, {transform_indices = @transform_1, window_bounds = array<i64: 7, 256>}, {pipeline_mode = #tpu.pipeline_mode<synchronous>, transform_indices = @transform_2, window_bounds = array<i64: 1, 1>}, {transform_indices = @transform_3, window_bounds = array<i64: 1, 256>}]} {
    %c0 = arith.constant 0 : index
    %c0_0 = arith.constant 0 : index
    %0 = vector.load %arg1[%c0, %c0_0] : memref<1x7xbf16, #tpu.memory_space<vmem>>, vector<1x7xbf16>
    %c0_1 = arith.constant 0 : index
    %c0_2 = arith.constant 0 : index
    %1 = vector.load %arg2[%c0_1, %c0_2] : memref<7x256xbf16, #tpu.memory_space<vmem>>, vector<7x256xbf16>
    %cst = arith.constant dense<0.000000e+00> : vector<1x256xf32>
    %2 = tpu.matmul %0, %1, %cst {dimension_numbers = #tpu.dot_dimension_numbers<[1], [0], [0], [1], [0, 0, 1, 1], [], []>} : vector<1x7xbf16>, vector<7x256xbf16>, vector<1x256xf32> -> vector<1x256xf32>
    %c0_3 = arith.constant 0 : index
    %c0_4 = arith.constant 0 : index
    %3 = vector.load %arg3[%c0_3, %c0_4] : memref<1x1xf32, #tpu.memory_space<vmem>>, vector<1x1xf32>
    %4 = vector.broadcast %3 : vector<1x1xf32> to vector<1x256xf32>
    %5 = arith.addf %2, %4 : vector<1x256xf32>
    %6 = arith.negf %5 : vector<1x256xf32>
    %7 = math.exp %6 : vector<1x256xf32>
    %cst_5 = arith.constant 1.000000e+00 : f32
    %8 = vector.broadcast %cst_5 : f32 to vector<1x256xf32>
    %9 = arith.addf %8, %7 : vector<1x256xf32>
    %10 = arith.divf %8, %9 : vector<1x256xf32>
    %cst_6 = arith.constant 2.560000e+02 : f32
    %11 = vector.broadcast %cst_6 : f32 to vector<1x256xf32>
    %12 = arith.mulf %11, %10 : vector<1x256xf32>
    %c0_7 = arith.constant 0 : index
    %c0_8 = arith.constant 0 : index
    %13 = vector.load %arg4[%c0_7, %c0_8] : memref<1x256xf32, #tpu.memory_space<vmem>>, vector<1x256xf32>
    tpu.vector_store %arg4[%c0_7, %c0_8], %12 {strides = array<i32>} : memref<1x256xf32, #tpu.memory_space<vmem>>, vector<1x256xf32>,
    return
  }
  func.func @transform_0(%arg0: i32) -> (i32, i32) {
    %c0_i32 = arith.constant 0 : i32
    %c0_i32_0 = arith.constant 0 : i32
    %c0_i32_1 = arith.constant 0 : i32
    return %c0_i32, %c0_i32_0 : i32, i32
  }
  func.func @transform_1(%arg0: i32) -> (i32, i32) {
    %c0_i32 = arith.constant 0 : i32
    %c0_i32_0 = arith.constant 0 : i32
    return %c0_i32, %arg0 : i32, i32
  }
  func.func @transform_2(%arg0: i32) -> (i32, i32) {
    %c0_i32 = arith.constant 0 : i32
    %c0_i32_0 = arith.constant 0 : i32
    %c0_i32_1 = arith.constant 0 : i32
    return %c0_i32, %c0_i32_0 : i32, i32
  }
  func.func @transform_3(%arg0: i32) -> (i32, i32) {
    %c0_i32 = arith.constant 0 : i32
    %c0_i32_0 = arith.constant 0 : i32
    return %c0_i32, %arg0 : i32, i32
  }
}

</mosaic_0001>

<llo_original>
// kernel: _lambda_.7
$region0: #{_lambda_.7}
  #allocation0 [shape = 'u32[]', space=smem, size = 0x4, offset = 0x4, fixed_abs, tag = 'smem constant byte address 0x4 - core index']
  #allocation1 [shape = 'u32[144,128]{1,0:T(1,128)}', space=vmem, size = 0x12000, scoped, tag = 'internal scratch']
  %s0 = inlined_call_operand.vmem [shape: bf16[4,27], index: 0, kind: input, shape index: {}]
  %s1 = inlined_call_operand.vmem [shape: bf16[27,512], index: 1, kind: input, shape index: {}]
  %s2 = inlined_call_operand.vmem [shape: f32[4,1], index: 2, kind: input, shape index: {}]
  %s3 = inlined_call_operand.vmem [shape: f32[4,512], index: 3, kind: output, shape index: {}]
  %s4 = sld [smem:[#allocation0]]
  $region83: #{_lambda_.7} parent=0
    _
  %s6 = ssub.s32 1, %s4
  %s7 = scalar_select 0, %s6, %s4
  $region1: #{_lambda_.7} parent=0
    #allocation2 [shape = 'u8[32768]{0}', space=vmem, size = 0x8000, scoped, tag = 'input window, operand 1']
    loop: start=0, step=1, limit=4
    $region2: #{_lambda_.7} parent=1 // loop_pre_header
      _
    $region3: #{_lambda_.7} parent=1 // loop_header
      %s9 = sphi 0, %s13
      %p10 = scmp.ge.s32.totalorder %s9, 4
      %s17 = sphi 0, %s17
      %s19 = sphi 0, %s17
      %s20 = sphi 0, %s19
      %s34 = sphi 0, %s20
      %s40 = sphi 0, %s42
      %s43 = sphi 0, %s40
      %s44 = sphi 0, %s43
      %s60 = sphi 0, %s44
      %s64 = sphi 0, %s64
      %s66 = sphi 0, %s64
      %s67 = sphi 0, %s66
      %s81 = sphi 0, %s67
      %s87 = sphi 0, %s89
      %s90 = sphi 0, %s87
      %s91 = sphi 0, %s90
      %s107 = sphi 0, %s91
    $region4: #{_lambda_.7} parent=1 // loop_header_branch
      %12 = sbr.rel (%p10) target = $region8
    $region5: #{_lambda_.7} parent=1 // loop_body
      %s14 = ssub.s32 %s9, 1
      %s15 = ssub.s32 %s9, 2
      %s16 = sadd.s32 %s9, 1
      %s18 = sadd.s32 %s17, 1
      %p21 = scmp.eq.s32.totalorder %s9, 1
      %p22 = scmp.ne.s32.totalorder %s17, %s19
      %p23 = scmp.eq.s32.totalorder %s9, 0
      %p24 = por %p22, %p23
      %p25 = scmp.ne.s32.totalorder %s17, %s19
      %p26 = scmp.eq.s32.totalorder %s14, 1
      %p27 = por %p25, %p26
      %p28 = scmp.ne.s32.totalorder %s19, %s20
      %p29 = scmp.eq.s32.totalorder %s14, 0
      %p30 = por %p28, %p29
      %p31 = scmp.ne.s32.totalorder %s19, %s20
      %p32 = scmp.eq.s32.totalorder %s15, 1
      %p33 = por %p31, %p32
      %p35 = scmp.ne.s32.totalorder %s20, %s34
      %p36 = scmp.eq.s32.totalorder %s15, 0
      %p37 = por %p35, %p36
      %s38 = ssub.s32 %s9, %s16
      %p39 = scmp.eq.s32.totalorder %s38, 0
      %s41 = sadd.s32 %s40, 1
      %s42 = scalar_select %p39, %s40, %s41
      %p45 = pneg %p39
      %p46 = scmp.eq.s32.totalorder %s9, 1
      %p47 = por %p45, %p46
      %p48 = scmp.ne.s32.totalorder %s40, %s43
      %p49 = scmp.eq.s32.totalorder %s9, 0
      %p50 = por %p48, %p49
      %p51 = scmp.ne.s32.totalorder %s40, %s43
      %p52 = scmp.eq.s32.totalorder %s14, 1
      %p53 = por %p51, %p52
      %p54 = scmp.ne.s32.totalorder %s43, %s44
      %p55 = scmp.eq.s32.totalorder %s14, 0
      %p56 = por %p54, %p55
      %p57 = scmp.ne.s32.totalorder %s43, %s44
      %p58 = scmp.eq.s32.totalorder %s15, 1
      %p59 = por %p57, %p58
      %p61 = scmp.ne.s32.totalorder %s44, %s60
      %p62 = scmp.eq.s32.totalorder %s15, 0
      %p63 = por %p61, %p62
      %s65 = sadd.s32 %s64, 1
      %p68 = scmp.eq.s32.totalorder %s9, 1
      %p69 = scmp.ne.s32.totalorder %s64, %s66
      %p70 = scmp.eq.s32.totalorder %s9, 0
      %p71 = por %p69, %p70
      %p72 = scmp.ne.s32.totalorder %s64, %s66
      %p73 = scmp.eq.s32.totalorder %s14, 1
      %p74 = por %p72, %p73
      %p75 = scmp.ne.s32.totalorder %s66, %s67
      %p76 = scmp.eq.s32.totalorder %s14, 0
      %p77 = por %p75, %p76
      %p78 = scmp.ne.s32.totalorder %s66, %s67
      %p79 = scmp.eq.s32.totalorder %s15, 1
      %p80 = por %p78, %p79
      %p82 = scmp.ne.s32.totalorder %s67, %s81
      %p83 = scmp.eq.s32.totalorder %s15, 0
      %p84 = por %p82, %p83
      %s85 = ssub.s32 %s9, %s16
      %p86 = scmp.eq.s32.totalorder %s85, 0
      %s88 = sadd.s32 %s87, 1
      %s89 = scalar_select %p86, %s87, %s88
      %p92 = pneg %p86
      %p93 = scmp.eq.s32.totalorder %s9, 1
      %p94 = por %p92, %p93
      %p95 = scmp.ne.s32.totalorder %s87, %s90
      %p96 = scmp.eq.s32.totalorder %s9, 0
      %p97 = por %p95, %p96
      %p98 = scmp.ne.s32.totalorder %s87, %s90
      %p99 = scmp.eq.s32.totalorder %s14, 1
      %p100 = por %p98, %p99
      %p101 = scmp.ne.s32.totalorder %s90, %s91
      %p102 = scmp.eq.s32.totalorder %s14, 0
      %p103 = por %p101, %p102
      %p104 = scmp.ne.s32.totalorder %s90, %s91
      %p105 = scmp.eq.s32.totalorder %s15, 1
      %p106 = por %p104, %p105
      %p108 = scmp.ne.s32.totalorder %s91, %s107
      %p109 = scmp.eq.s32.totalorder %s15, 0
      %p110 = por %p108, %p109
      %p111 = scmp.le.s32.totalorder 1, %s9
      %p112 = scmp.lt.s32.totalorder %s9, 3
      %p113 = pnand %p111, %p112
      %p114 = pneg %p113
      // Predicated region
      $region9: #{_lambda_.7} parent=5 // pred_check
        _
      $region10: #{_lambda_.7} parent=5 // pred_check_branch
        %116 = sbr.rel (%p113) target = $region12
      $region11: #{_lambda_.7} parent=5 // pred_region
        %s117 = ssub.s32 %s9, 1
        // Predicated region
        $region13: #{_lambda_.7} parent=11 // pred_check
          %p118 = pneg %p30
        $region14: #{_lambda_.7} parent=11 // pred_check_branch
          %120 = sbr.rel (%p118) target = $region16
        $region15: #{_lambda_.7} parent=11 // pred_region
          _
        $region16: #{_lambda_.7} parent=11 // pred_fallthru
          _
        // Predicated region
        $region17: #{_lambda_.7} parent=11 // pred_check
          %p121 = pneg %p77
        $region18: #{_lambda_.7} parent=11 // pred_check_branch
          %123 = sbr.rel (%p121) target = $region20
        $region19: #{_lambda_.7} parent=11 // pred_region
          _
        $region20: #{_lambda_.7} parent=11 // pred_fallthru
          _
      $region12: #{_lambda_.7} parent=5 // pred_fallthru
        _
      %p124 = scmp.lt.s32.totalorder %s9, 2
      // Predicated region
      $region21: #{_lambda_.7} parent=5 // pred_check
        %p125 = pneg %p124
      $region22: #{_lambda_.7} parent=5 // pred_check_branch
        %127 = sbr.rel (%p125) target = $region24
      $region23: #{_lambda_.7} parent=5 // pred_region
        // Predicated region
        $region25: #{_lambda_.7} parent=23 // pred_check
          %p128 = pneg %p50
        $region26: #{_lambda_.7} parent=23 // pred_check_branch
          %130 = sbr.rel (%p128) target = $region28
        $region27: #{_lambda_.7} parent=23 // pred_region
          %s131 = sand.u32 %s40, 1
          %s132 = sand.u32 %s40, 1
          %s133 = smul.addr %s132, 32
          %s134 = scalar_lea.vmem [#allocation2], %s133
          %s135 = smul.u32 2, %s9
          %s136 = smul.addr %s135, 4
          %s137 = scalar_lea.vmem %s1, %s136
          // Predicated region
          $region29: #{_lambda_.7} parent=27 // pred_check
            _
          $region30: #{_lambda_.7} parent=27 // pred_check_branch
            %139 = sbr.rel (0) target = $region32
          $region31: #{_lambda_.7} parent=27 // pred_region
            // Predicated region
            $region33: #{_lambda_.7} parent=31 // pred_check
              _
            $region34: #{_lambda_.7} parent=31 // pred_check_branch
              %141 = sbr.rel (0) target = $region36
            $region35: #{_lambda_.7} parent=31 // pred_region
              // Predicated region
              $region48: #{_lambda_.7} parent=35 // pred_check
                _
              $region49: #{_lambda_.7} parent=35 // pred_check_branch
                %162 = sbr.rel (0) target = $region51
              $region50: #{_lambda_.7} parent=35 // pred_region
                loop: start=0, step=1, limit=1
                $region52: #{_lambda_.7} parent=50 // loop_pre_header
                  _
                $region53: #{_lambda_.7} parent=50 // loop_header
                  %s164 = sphi 0, %s168
                  %p165 = scmp.ge.s32.totalorder %s164, 1
                  %s169 = sphi %s137, %s137
                  %s170 = sphi %s134, %s134
                $region54: #{_lambda_.7} parent=50 // loop_header_branch
                  %167 = sbr.rel (%p165) target = $region58
                $region55: #{_lambda_.7} parent=50 // loop_body
                  %v171 = vld [vmem:[%s169] sm:$0xff]
                  %172 = vst [vmem:[%s170] sm:$0xff] %v171
                  %v173 = vld [vmem:[%s169 + $0x10] sm:$0xff]
                  %174 = vst [vmem:[%s170 + $0x8] sm:$0xff] %v173
                  %v175 = vld [vmem:[%s169 + $0x20] sm:$0xff]
                  %176 = vst [vmem:[%s170 + $0x10] sm:$0xff] %v175
                  %v177 = vld [vmem:[%s169 + $0x30] sm:$0xff]
                  %178 = vst [vmem:[%s170 + $0x18] sm:$0xff] %v177
                $region56: #{_lambda_.7} parent=50 // loop_footer
                  %s168 = sadd.s32 1, %s164
                $region57: #{_lambda_.7} parent=50 // loop_footer_branch
                  %163 = sbr.rel target = $region53
                $region58: #{_lambda_.7} parent=50 // loop_exit
                  _
              $region51: #{_lambda_.7} parent=35 // pred_fallthru
                _
              // Predicated region
              $region59: #{_lambda_.7} parent=35 // pred_check
                _
              $region60: #{_lambda_.7} parent=35 // pred_check_branch
                %180 = sbr.rel target = $region62
              $region61: #{_lambda_.7} parent=35 // pred_region
                _
              $region62: #{_lambda_.7} parent=35 // pred_fallthru
                _
            $region36: #{_lambda_.7} parent=31 // pred_fallthru
              _
            // Predicated region
            $region37: #{_lambda_.7} parent=31 // pred_check
              _
            $region38: #{_lambda_.7} parent=31 // pred_check_branch
              %143 = sbr.rel target = $region40
            $region39: #{_lambda_.7} parent=31 // pred_region
              loop: start=0, step=1, limit=1
              $region41: #{_lambda_.7} parent=39 // loop_pre_header
                _
              $region42: #{_lambda_.7} parent=39 // loop_header
                %s146 = sphi 0, %s150
                %p147 = scmp.ge.s32.totalorder %s146, 1
                %s151 = sphi %s137, %s137
                %s152 = sphi %s134, %s134
              $region43: #{_lambda_.7} parent=39 // loop_header_branch
                %149 = sbr.rel (%p147) target = $region47
              $region44: #{_lambda_.7} parent=39 // loop_body
                %v153 = vld [vmem:[%s151] sm:$0xff]
                %154 = vst [vmem:[%s152] sm:$0xff] %v153
                %v155 = vld [vmem:[%s151 + $0x10] sm:$0xff]
                %156 = vst [vmem:[%s152 + $0x8] sm:$0xff] %v155
                %v157 = vld [vmem:[%s151 + $0x20] sm:$0xff]
                %158 = vst [vmem:[%s152 + $0x10] sm:$0xff] %v157
                %v159 = vld [vmem:[%s151 + $0x30] sm:$0xff]
                %160 = vst [vmem:[%s152 + $0x18] sm:$0xff] %v159
              $region45: #{_lambda_.7} parent=39 // loop_footer
                %s150 = sadd.s32 1, %s146
              $region46: #{_lambda_.7} parent=39 // loop_footer_branch
                %145 = sbr.rel target = $region42
              $region47: #{_lambda_.7} parent=39 // loop_exit
                _
            $region40: #{_lambda_.7} parent=31 // pred_fallthru
              _
          $region32: #{_lambda_.7} parent=27 // pred_fallthru
            _
          %181 = vnop
        $region28: #{_lambda_.7} parent=23 // pred_fallthru
          _
      $region24: #{_lambda_.7} parent=5 // pred_fallthru
        _
      %p182 = scmp.le.s32.totalorder 1, %s9
      %p183 = scmp.lt.s32.totalorder %s9, 3
      %p184 = pnand %p182, %p183
      %p185 = pneg %p184
      // Predicated region
      $region63: #{_lambda_.7} parent=5 // pred_check
        _
      $region64: #{_lambda_.7} parent=5 // pred_check_branch
        %187 = sbr.rel (%p184) target = $region66
      $region65: #{_lambda_.7} parent=5 // pred_region
        %s188 = ssub.s32 %s9, 1
        %s189 = sand.u32 %s43, 1
        %s190 = sand.u32 %s43, 1
        %s191 = smul.addr %s190, 32
        %s192 = scalar_lea.vmem [#allocation2], %s191
        // Predicated region
        $region67: #{_lambda_.7} parent=65 // pred_check
          %p193 = pneg %p56
        $region68: #{_lambda_.7} parent=65 // pred_check_branch
          %195 = sbr.rel (%p193) target = $region70
        $region69: #{_lambda_.7} parent=65 // pred_region
          _
        $region70: #{_lambda_.7} parent=65 // pred_fallthru
          _
        %p196 = pneg %p30
        %p197 = pneg %p27
        %s198 = sand.u32 %s43, 1
        %s199 = sand.u32 %s43, 1
        %s200 = smul.addr %s199, 32
        %s201 = scalar_lea.vmem [#allocation2], %s200
        %p202 = pneg %p56
        %p203 = pneg %p53
        %p204 = pneg %p77
        %p205 = pneg %p74
        %p206 = pneg %p103
        %p207 = pneg %p100
        %s208 = smul.u32 2, %s14
        %p209 = scmp.lt.s32.totalorder %s208, 3
        %s210 = scalar_select %p209, %s208, 3
        %s211 = smul.addr %s210, 4
        %s212 = scalar_lea.vmem %s3, %s211
        %s213 = smul.u32 2, %s14
        %s214 = smul.u32 2, %s14
        %p215 = scmp.lt.s32.totalorder %s214, 3
        %s216 = scalar_select %p215, %s214, 3
        %s217 = smul.addr %s216, 4
        %s218 = scalar_lea.vmem %s3, %s217
        %s219 = smul.u32 2, %s14
        %v221 = vld [vmem:[%s0] sm:$0x3]
        %v222 = vld [vmem:[%s192] sm:$0xff]
        %v223 = vld [vmem:[%s192 + $0x8] sm:$0xff]
        %v224 = vld [vmem:[%s192 + $0x10] sm:$0xff]
        %v225 = vld [vmem:[%s192 + $0x18] sm:$0x33]
        %v226 = vld [vmem:[%s2] sm:$0xf]
        %228 = vset.pattern.permute.xlu0 0
        %229 = vperm.xlu0 %228, %v226
        %v230 = vpop.permute.xlu0 %229
        %v236 = vunpack.c.l.b16 %v222
        %v237 = vunpack.c.h.b16 %v222
        %v238 = vunpack.c.l.b16 %v223
        %v239 = vunpack.c.h.b16 %v223
        %v240 = vunpack.c.l.b16 %v224
        %v241 = vunpack.c.h.b16 %v224
        %v242 = vunpack.c.l.b16 %v225
        %v243 = vunpack.c.h.b16 %v225
        %v244 = vpack.c.b16 %v238, %v236
        %v245 = vpack.c.b16 %v239, %v237
        %v246 = vpack.c.b16 %v242, %v240
        %v247 = vpack.c.b16 %v243, %v241
        %vm250 = vcmask 220160
        %v252 = vsel %vm250, %v221, 0
        %vm254 = vcmask 1044480
        %vm255 = vcmask 1045504
        %v256 = vsel %vm254, 4294967295, 65535
        %v257 = vsel %vm255, %v256, 0
        %v259 = vand.u32 %v246, %v257
        %v262 = vand.u32 %v247, %v257
        %264 = vmatprep.subr.bf16.mxu0 %v245
        %265 = vmatpush1.bf16.msra.mxu0 %v244
        %266 = vmatprep.subr.bf16.mxu0 %v262
        %267 = vmatpush1.bf16.msra.mxu0 %v259
        %268 = vmatprep.subr.bf16.mxu0 0
        %269 = vmatpush1.bf16.msra.mxu0 0
        %270 = vmatprep.subr.bf16.mxu0 0
        %271 = vmatpush1.bf16.msra.mxu0 0
        %272 = vmatprep.subr.bf16.mxu0 0
        %273 = vmatpush1.bf16.msra.mxu0 0
        %274 = vmatprep.subr.bf16.mxu0 0
        %275 = vmatpush1.bf16.msra.mxu0 0
        %276 = vmatprep.subr.bf16.mxu0 0
        %277 = vmatpush1.bf16.msra.mxu0 0
        %278 = vmatprep.subr.bf16.mxu0 0
        %279 = vmatpush1.bf16.msra.mxu0 0
        %280 = vmatprep.subr.bf16.mxu0 0
        %281 = vmatpush1.bf16.msra.mxu0 0
        %282 = vmatprep.subr.bf16.mxu0 0
        %283 = vmatpush1.bf16.msra.mxu0 0
        %284 = vmatprep.subr.bf16.mxu0 0
        %285 = vmatpush1.bf16.msra.mxu0 0
        %286 = vmatprep.subr.bf16.mxu0 0
        %287 = vmatpush1.bf16.msra.mxu0 0
        %288 = vmatprep.subr.bf16.mxu0 0
        %289 = vmatpush1.bf16.msra.mxu0 0
        %290 = vmatprep.subr.bf16.mxu0 0
        %291 = vmatpush1.bf16.msra.mxu0 0
        %292 = vmatprep.subr.bf16.mxu0 0
        %293 = vmatpush1.bf16.msra.mxu0 0
        %294 = vmatprep.subr.bf16.mxu0 0
        %295 = vmatpush1.bf16.msra.mxu0 0
        %296 = vmatprep.mubr.bf16.mxu0 0
        %297 = vmatmul.mubr.bf16.gmra.mrb[0].mxu0 %v252
        %v298 = vpop.f32.mrb[0].mxu0
        %v299 = vadd.f32 %v230, %v298
        %v300 = vpop.f32.mrb[0].mxu0
        %v301 = vadd.f32 %v230, %v300
        %v302 = vpop.f32.mrb[0].mxu0
        %v303 = vpop.f32.mrb[0].mxu0
        %304 = vdwg.mxu0
        %v307 = vcombine.low %v299, %v301
        %309 = vst [vmem:[%s218] sm:$0xff] %v307
        %s310 = smul.u32 2, %s14
        %p311 = scmp.lt.s32.totalorder %s310, 3
        %s312 = scalar_select %p311, %s310, 3
        %s313 = smul.addr %s312, 4
        %s314 = scalar_lea.vmem %s3, %s313
        // Predicated region
        $region71: #{_lambda_.7} parent=65 // pred_check
          %p315 = pneg %p100
        $region72: #{_lambda_.7} parent=65 // pred_check_branch
          %317 = sbr.rel (%p315) target = $region74
        $region73: #{_lambda_.7} parent=65 // pred_region
          %s318 = smul.u32 2, %s14
        $region74: #{_lambda_.7} parent=65 // pred_fallthru
          _
      $region66: #{_lambda_.7} parent=5 // pred_fallthru
        _
      %p319 = scmp.le.s32.totalorder 2, %s9
      // Predicated region
      $region75: #{_lambda_.7} parent=5 // pred_check
        %p320 = pneg %p319
      $region76: #{_lambda_.7} parent=5 // pred_check_branch
        %322 = sbr.rel (%p320) target = $region78
      $region77: #{_lambda_.7} parent=5 // pred_region
        %s323 = ssub.s32 %s9, 2
        // Predicated region
        $region79: #{_lambda_.7} parent=77 // pred_check
          %p324 = pneg %p106
        $region80: #{_lambda_.7} parent=77 // pred_check_branch
          %326 = sbr.rel (%p324) target = $region82
        $region81: #{_lambda_.7} parent=77 // pred_region
          %s327 = smul.u32 2, %s15
          %p328 = scmp.lt.s32.totalorder %s327, 3
          %s329 = scalar_select %p328, %s327, 3
          %s330 = smul.addr %s329, 4
          %s331 = scalar_lea.vmem %s3, %s330
        $region82: #{_lambda_.7} parent=77 // pred_fallthru
          _
      $region78: #{_lambda_.7} parent=5 // pred_fallthru
        _
    $region6: #{_lambda_.7} parent=1 // loop_footer
      %s13 = sadd.s32 1, %s9
    $region7: #{_lambda_.7} parent=1 // loop_footer_branch
      %8 = sbr.rel target = $region3
    $region8: #{_lambda_.7} parent=1 // loop_exit
      _

// kernel: _lambda_.8
$region0: #{_lambda_.8}
  #allocation0 [shape = 'u32[]', space=smem, size = 0x4, offset = 0x4, fixed_abs, tag = 'smem constant byte address 0x4 - core index']
  #allocation1 [shape = 'u32[144,128]{1,0:T(1,128)}', space=vmem, size = 0x12000, scoped, tag = 'internal scratch']
  %s0 = inlined_call_operand.vmem [shape: bf16[4,108], index: 0, kind: input, shape index: {}]
  %s1 = inlined_call_operand.vmem [shape: bf16[108,512], index: 1, kind: input, shape index: {}]
  %s2 = inlined_call_operand.vmem [shape: f32[4,1], index: 2, kind: input, shape index: {}]
  %s3 = inlined_call_operand.vmem [shape: f32[4,512], index: 3, kind: output, shape index: {}]
  %s4 = sld [smem:[#allocation0]]
  $region83: #{_lambda_.8} parent=0
    _
  %s6 = ssub.s32 1, %s4
  %s7 = scalar_select 0, %s6, %s4
  $region1: #{_lambda_.8} parent=0
    #allocation2 [shape = 'u8[114688]{0}', space=vmem, size = 0x1c000, scoped, tag = 'input window, operand 1']
    loop: start=0, step=1, limit=4
    $region2: #{_lambda_.8} parent=1 // loop_pre_header
      _
    $region3: #{_lambda_.8} parent=1 // loop_header
      %s9 = sphi 0, %s13
      %p10 = scmp.ge.s32.totalorder %s9, 4
      %s17 = sphi 0, %s17
      %s19 = sphi 0, %s17
      %s20 = sphi 0, %s19
      %s34 = sphi 0, %s20
      %s40 = sphi 0, %s42
      %s43 = sphi 0, %s40
      %s44 = sphi 0, %s43
      %s60 = sphi 0, %s44
      %s64 = sphi 0, %s64
      %s66 = sphi 0, %s64
      %s67 = sphi 0, %s66
      %s81 = sphi 0, %s67
      %s87 = sphi 0, %s89
      %s90 = sphi 0, %s87
      %s91 = sphi 0, %s90
      %s107 = sphi 0, %s91
    $region4: #{_lambda_.8} parent=1 // loop_header_branch
      %12 = sbr.rel (%p10) target = $region8
    $region5: #{_lambda_.8} parent=1 // loop_body
      %s14 = ssub.s32 %s9, 1
      %s15 = ssub.s32 %s9, 2
      %s16 = sadd.s32 %s9, 1
      %s18 = sadd.s32 %s17, 1
      %p21 = scmp.eq.s32.totalorder %s9, 1
      %p22 = scmp.ne.s32.totalorder %s17, %s19
      %p23 = scmp.eq.s32.totalorder %s9, 0
      %p24 = por %p22, %p23
      %p25 = scmp.ne.s32.totalorder %s17, %s19
      %p26 = scmp.eq.s32.totalorder %s14, 1
      %p27 = por %p25, %p26
      %p28 = scmp.ne.s32.totalorder %s19, %s20
      %p29 = scmp.eq.s32.totalorder %s14, 0
      %p30 = por %p28, %p29
      %p31 = scmp.ne.s32.totalorder %s19, %s20
      %p32 = scmp.eq.s32.totalorder %s15, 1
      %p33 = por %p31, %p32
      %p35 = scmp.ne.s32.totalorder %s20, %s34
      %p36 = scmp.eq.s32.totalorder %s15, 0
      %p37 = por %p35, %p36
      %s38 = ssub.s32 %s9, %s16
      %p39 = scmp.eq.s32.totalorder %s38, 0
      %s41 = sadd.s32 %s40, 1
      %s42 = scalar_select %p39, %s40, %s41
      %p45 = pneg %p39
      %p46 = scmp.eq.s32.totalorder %s9, 1
      %p47 = por %p45, %p46
      %p48 = scmp.ne.s32.totalorder %s40, %s43
      %p49 = scmp.eq.s32.totalorder %s9, 0
      %p50 = por %p48, %p49
      %p51 = scmp.ne.s32.totalorder %s40, %s43
      %p52 = scmp.eq.s32.totalorder %s14, 1
      %p53 = por %p51, %p52
      %p54 = scmp.ne.s32.totalorder %s43, %s44
      %p55 = scmp.eq.s32.totalorder %s14, 0
      %p56 = por %p54, %p55
      %p57 = scmp.ne.s32.totalorder %s43, %s44
      %p58 = scmp.eq.s32.totalorder %s15, 1
      %p59 = por %p57, %p58
      %p61 = scmp.ne.s32.totalorder %s44, %s60
      %p62 = scmp.eq.s32.totalorder %s15, 0
      %p63 = por %p61, %p62
      %s65 = sadd.s32 %s64, 1
      %p68 = scmp.eq.s32.totalorder %s9, 1
      %p69 = scmp.ne.s32.totalorder %s64, %s66
      %p70 = scmp.eq.s32.totalorder %s9, 0
      %p71 = por %p69, %p70
      %p72 = scmp.ne.s32.totalorder %s64, %s66
      %p73 = scmp.eq.s32.totalorder %s14, 1
      %p74 = por %p72, %p73
      %p75 = scmp.ne.s32.totalorder %s66, %s67
      %p76 = scmp.eq.s32.totalorder %s14, 0
      %p77 = por %p75, %p76
      %p78 = scmp.ne.s32.totalorder %s66, %s67
      %p79 = scmp.eq.s32.totalorder %s15, 1
      %p80 = por %p78, %p79
      %p82 = scmp.ne.s32.totalorder %s67, %s81
      %p83 = scmp.eq.s32.totalorder %s15, 0
      %p84 = por %p82, %p83
      %s85 = ssub.s32 %s9, %s16
      %p86 = scmp.eq.s32.totalorder %s85, 0
      %s88 = sadd.s32 %s87, 1
      %s89 = scalar_select %p86, %s87, %s88
      %p92 = pneg %p86
      %p93 = scmp.eq.s32.totalorder %s9, 1
      %p94 = por %p92, %p93
      %p95 = scmp.ne.s32.totalorder %s87, %s90
      %p96 = scmp.eq.s32.totalorder %s9, 0
      %p97 = por %p95, %p96
      %p98 = scmp.ne.s32.totalorder %s87, %s90
      %p99 = scmp.eq.s32.totalorder %s14, 1
      %p100 = por %p98, %p99
      %p101 = scmp.ne.s32.totalorder %s90, %s91
      %p102 = scmp.eq.s32.totalorder %s14, 0
      %p103 = por %p101, %p102
      %p104 = scmp.ne.s32.totalorder %s90, %s91
      %p105 = scmp.eq.s32.totalorder %s15, 1
      %p106 = por %p104, %p105
      %p108 = scmp.ne.s32.totalorder %s91, %s107
      %p109 = scmp.eq.s32.totalorder %s15, 0
      %p110 = por %p108, %p109
      %p111 = scmp.le.s32.totalorder 1, %s9
      %p112 = scmp.lt.s32.totalorder %s9, 3
      %p113 = pnand %p111, %p112
      %p114 = pneg %p113
      // Predicated region
      $region9: #{_lambda_.8} parent=5 // pred_check
        _
      $region10: #{_lambda_.8} parent=5 // pred_check_branch
        %116 = sbr.rel (%p113) target = $region12
      $region11: #{_lambda_.8} parent=5 // pred_region
        %s117 = ssub.s32 %s9, 1
        // Predicated region
        $region13: #{_lambda_.8} parent=11 // pred_check
          %p118 = pneg %p30
        $region14: #{_lambda_.8} parent=11 // pred_check_branch
          %120 = sbr.rel (%p118) target = $region16
        $region15: #{_lambda_.8} parent=11 // pred_region
          _
        $region16: #{_lambda_.8} parent=11 // pred_fallthru
          _
        // Predicated region
        $region17: #{_lambda_.8} parent=11 // pred_check
          %p121 = pneg %p77
        $region18: #{_lambda_.8} parent=11 // pred_check_branch
          %123 = sbr.rel (%p121) target = $region20
        $region19: #{_lambda_.8} parent=11 // pred_region
          _
        $region20: #{_lambda_.8} parent=11 // pred_fallthru
          _
      $region12: #{_lambda_.8} parent=5 // pred_fallthru
        _
      %p124 = scmp.lt.s32.totalorder %s9, 2
      // Predicated region
      $region21: #{_lambda_.8} parent=5 // pred_check
        %p125 = pneg %p124
      $region22: #{_lambda_.8} parent=5 // pred_check_branch
        %127 = sbr.rel (%p125) target = $region24
      $region23: #{_lambda_.8} parent=5 // pred_region
        // Predicated region
        $region25: #{_lambda_.8} parent=23 // pred_check
          %p128 = pneg %p50
        $region26: #{_lambda_.8} parent=23 // pred_check_branch
          %130 = sbr.rel (%p128) target = $region28
        $region27: #{_lambda_.8} parent=23 // pred_region
          %s131 = sand.u32 %s40, 1
          %s132 = sand.u32 %s40, 1
          %s133 = smul.addr %s132, 112
          %s134 = scalar_lea.vmem [#allocation2], %s133
          %s135 = smul.u32 2, %s9
          %s136 = smul.addr %s135, 4
          %s137 = scalar_lea.vmem %s1, %s136
          // Predicated region
          $region29: #{_lambda_.8} parent=27 // pred_check
            _
          $region30: #{_lambda_.8} parent=27 // pred_check_branch
            %139 = sbr.rel (0) target = $region32
          $region31: #{_lambda_.8} parent=27 // pred_region
            // Predicated region
            $region33: #{_lambda_.8} parent=31 // pred_check
              _
            $region34: #{_lambda_.8} parent=31 // pred_check_branch
              %141 = sbr.rel (0) target = $region36
            $region35: #{_lambda_.8} parent=31 // pred_region
              // Predicated region
              $region48: #{_lambda_.8} parent=35 // pred_check
                _
              $region49: #{_lambda_.8} parent=35 // pred_check_branch
                %182 = sbr.rel (0) target = $region51
              $region50: #{_lambda_.8} parent=35 // pred_region
                loop: start=0, step=1, limit=1
                $region52: #{_lambda_.8} parent=50 // loop_pre_header
                  _
                $region53: #{_lambda_.8} parent=50 // loop_header
                  %s184 = sphi 0, %s188
                  %p185 = scmp.ge.s32.totalorder %s184, 1
                  %s189 = sphi %s137, %s137
                  %s190 = sphi %s134, %s134
                $region54: #{_lambda_.8} parent=50 // loop_header_branch
                  %187 = sbr.rel (%p185) target = $region58
                $region55: #{_lambda_.8} parent=50 // loop_body
                  %v191 = vld [vmem:[%s189] sm:$0xff]
                  %192 = vst [vmem:[%s190] sm:$0xff] %v191
                  %v193 = vld [vmem:[%s189 + $0x10] sm:$0xff]
                  %194 = vst [vmem:[%s190 + $0x8] sm:$0xff] %v193
                  %v195 = vld [vmem:[%s189 + $0x20] sm:$0xff]
                  %196 = vst [vmem:[%s190 + $0x10] sm:$0xff] %v195
                  %v197 = vld [vmem:[%s189 + $0x30] sm:$0xff]
                  %198 = vst [vmem:[%s190 + $0x18] sm:$0xff] %v197
                  %v199 = vld [vmem:[%s189 + $0x40] sm:$0xff]
                  %200 = vst [vmem:[%s190 + $0x20] sm:$0xff] %v199
                  %v201 = vld [vmem:[%s189 + $0x50] sm:$0xff]
                  %202 = vst [vmem:[%s190 + $0x28] sm:$0xff] %v201
                  %v203 = vld [vmem:[%s189 + $0x60] sm:$0xff]
                  %204 = vst [vmem:[%s190 + $0x30] sm:$0xff] %v203
                  %v205 = vld [vmem:[%s189 + $0x70] sm:$0xff]
                  %206 = vst [vmem:[%s190 + $0x38] sm:$0xff] %v205
                  %v207 = vld [vmem:[%s189 + $0x80] sm:$0xff]
                  %208 = vst [vmem:[%s190 + $0x40] sm:$0xff] %v207
                  %v209 = vld [vmem:[%s189 + $0x90] sm:$0xff]
                  %210 = vst [vmem:[%s190 + $0x48] sm:$0xff] %v209
                  %v211 = vld [vmem:[%s189 + $0xa0] sm:$0xff]
                  %212 = vst [vmem:[%s190 + $0x50] sm:$0xff] %v211
                  %v213 = vld [vmem:[%s189 + $0xb0] sm:$0xff]
                  %214 = vst [vmem:[%s190 + $0x58] sm:$0xff] %v213
                  %v215 = vld [vmem:[%s189 + $0xc0] sm:$0xff]
                  %216 = vst [vmem:[%s190 + $0x60] sm:$0xff] %v215
                  %v217 = vld [vmem:[%s189 + $0xd0] sm:$0xff]
                  %218 = vst [vmem:[%s190 + $0x68] sm:$0xff] %v217
                $region56: #{_lambda_.8} parent=50 // loop_footer
                  %s188 = sadd.s32 1, %s184
                $region57: #{_lambda_.8} parent=50 // loop_footer_branch
                  %183 = sbr.rel target = $region53
                $region58: #{_lambda_.8} parent=50 // loop_exit
                  _
              $region51: #{_lambda_.8} parent=35 // pred_fallthru
                _
              // Predicated region
              $region59: #{_lambda_.8} parent=35 // pred_check
                _
              $region60: #{_lambda_.8} parent=35 // pred_check_branch
                %220 = sbr.rel target = $region62
              $region61: #{_lambda_.8} parent=35 // pred_region
                _
              $region62: #{_lambda_.8} parent=35 // pred_fallthru
                _
            $region36: #{_lambda_.8} parent=31 // pred_fallthru
              _
            // Predicated region
            $region37: #{_lambda_.8} parent=31 // pred_check
              _
            $region38: #{_lambda_.8} parent=31 // pred_check_branch
              %143 = sbr.rel target = $region40
            $region39: #{_lambda_.8} parent=31 // pred_region
              loop: start=0, step=1, limit=1
              $region41: #{_lambda_.8} parent=39 // loop_pre_header
                _
              $region42: #{_lambda_.8} parent=39 // loop_header
                %s146 = sphi 0, %s150
                %p147 = scmp.ge.s32.totalorder %s146, 1
                %s151 = sphi %s137, %s137
                %s152 = sphi %s134, %s134
              $region43: #{_lambda_.8} parent=39 // loop_header_branch
                %149 = sbr.rel (%p147) target = $region47
              $region44: #{_lambda_.8} parent=39 // loop_body
                %v153 = vld [vmem:[%s151] sm:$0xff]
                %154 = vst [vmem:[%s152] sm:$0xff] %v153
                %v155 = vld [vmem:[%s151 + $0x10] sm:$0xff]
                %156 = vst [vmem:[%s152 + $0x8] sm:$0xff] %v155
                %v157 = vld [vmem:[%s151 + $0x20] sm:$0xff]
                %158 = vst [vmem:[%s152 + $0x10] sm:$0xff] %v157
                %v159 = vld [vmem:[%s151 + $0x30] sm:$0xff]
                %160 = vst [vmem:[%s152 + $0x18] sm:$0xff] %v159
                %v161 = vld [vmem:[%s151 + $0x40] sm:$0xff]
                %162 = vst [vmem:[%s152 + $0x20] sm:$0xff] %v161
                %v163 = vld [vmem:[%s151 + $0x50] sm:$0xff]
                %164 = vst [vmem:[%s152 + $0x28] sm:$0xff] %v163
                %v165 = vld [vmem:[%s151 + $0x60] sm:$0xff]
                %166 = vst [vmem:[%s152 + $0x30] sm:$0xff] %v165
                %v167 = vld [vmem:[%s151 + $0x70] sm:$0xff]
                %168 = vst [vmem:[%s152 + $0x38] sm:$0xff] %v167
                %v169 = vld [vmem:[%s151 + $0x80] sm:$0xff]
                %170 = vst [vmem:[%s152 + $0x40] sm:$0xff] %v169
                %v171 = vld [vmem:[%s151 + $0x90] sm:$0xff]
                %172 = vst [vmem:[%s152 + $0x48] sm:$0xff] %v171
                %v173 = vld [vmem:[%s151 + $0xa0] sm:$0xff]
                %174 = vst [vmem:[%s152 + $0x50] sm:$0xff] %v173
                %v175 = vld [vmem:[%s151 + $0xb0] sm:$0xff]
                %176 = vst [vmem:[%s152 + $0x58] sm:$0xff] %v175
                %v177 = vld [vmem:[%s151 + $0xc0] sm:$0xff]
                %178 = vst [vmem:[%s152 + $0x60] sm:$0xff] %v177
                %v179 = vld [vmem:[%s151 + $0xd0] sm:$0xff]
                %180 = vst [vmem:[%s152 + $0x68] sm:$0xff] %v179
              $region45: #{_lambda_.8} parent=39 // loop_footer
                %s150 = sadd.s32 1, %s146
              $region46: #{_lambda_.8} parent=39 // loop_footer_branch
                %145 = sbr.rel target = $region42
              $region47: #{_lambda_.8} parent=39 // loop_exit
                _
            $region40: #{_lambda_.8} parent=31 // pred_fallthru
              _
          $region32: #{_lambda_.8} parent=27 // pred_fallthru
            _
          %221 = vnop
        $region28: #{_lambda_.8} parent=23 // pred_fallthru
          _
      $region24: #{_lambda_.8} parent=5 // pred_fallthru
        _
      %p222 = scmp.le.s32.totalorder 1, %s9
      %p223 = scmp.lt.s32.totalorder %s9, 3
      %p224 = pnand %p222, %p223
      %p225 = pneg %p224
      // Predicated region
      $region63: #{_lambda_.8} parent=5 // pred_check
        _
      $region64: #{_lambda_.8} parent=5 // pred_check_branch
        %227 = sbr.rel (%p224) target = $region66
      $region65: #{_lambda_.8} parent=5 // pred_region
        %s228 = ssub.s32 %s9, 1
        %s229 = sand.u32 %s43, 1
        %s230 = sand.u32 %s43, 1
        %s231 = smul.addr %s230, 112
        %s232 = scalar_lea.vmem [#allocation2], %s231
        // Predicated region
        $region67: #{_lambda_.8} parent=65 // pred_check
          %p233 = pneg %p56
        $region68: #{_lambda_.8} parent=65 // pred_check_branch
          %235 = sbr.rel (%p233) target = $region70
        $region69: #{_lambda_.8} parent=65 // pred_region
          _
        $region70: #{_lambda_.8} parent=65 // pred_fallthru
          _
        %p236 = pneg %p30
        %p237 = pneg %p27
        %s238 = sand.u32 %s43, 1
        %s239 = sand.u32 %s43, 1
        %s240 = smul.addr %s239, 112
        %s241 = scalar_lea.vmem [#allocation2], %s240
        %p242 = pneg %p56
        %p243 = pneg %p53
        %p244 = pneg %p77
        %p245 = pneg %p74
        %p246 = pneg %p103
        %p247 = pneg %p100
        %s248 = smul.u32 2, %s14
        %p249 = scmp.lt.s32.totalorder %s248, 3
        %s250 = scalar_select %p249, %s248, 3
        %s251 = smul.addr %s250, 4
        %s252 = scalar_lea.vmem %s3, %s251
        %s253 = smul.u32 2, %s14
        %s254 = smul.u32 2, %s14
        %p255 = scmp.lt.s32.totalorder %s254, 3
        %s256 = scalar_select %p255, %s254, 3
        %s257 = smul.addr %s256, 4
        %s258 = scalar_lea.vmem %s3, %s257
        %s259 = smul.u32 2, %s14
        %v261 = vld [vmem:[%s0] sm:$0x3]
        %v262 = vld [vmem:[%s232] sm:$0xff]
        %v263 = vld [vmem:[%s232 + $0x8] sm:$0xff]
        %v264 = vld [vmem:[%s232 + $0x10] sm:$0xff]
        %v265 = vld [vmem:[%s232 + $0x18] sm:$0xff]
        %v266 = vld [vmem:[%s232 + $0x20] sm:$0xff]
        %v267 = vld [vmem:[%s232 + $0x28] sm:$0xff]
        %v268 = vld [vmem:[%s232 + $0x30] sm:$0xff]
        %v269 = vld [vmem:[%s232 + $0x38] sm:$0xff]
        %v270 = vld [vmem:[%s232 + $0x40] sm:$0xff]
        %v271 = vld [vmem:[%s232 + $0x48] sm:$0xff]
        %v272 = vld [vmem:[%s232 + $0x50] sm:$0xff]
        %v273 = vld [vmem:[%s232 + $0x58] sm:$0xff]
        %v274 = vld [vmem:[%s232 + $0x60] sm:$0xff]
        %v275 = vld [vmem:[%s232 + $0x68] sm:$0x33]
        %v276 = vld [vmem:[%s2] sm:$0xf]
        %278 = vset.pattern.permute.xlu0 0
        %279 = vperm.xlu0 %278, %v276
        %v280 = vpop.permute.xlu0 %279
        %v296 = vunpack.c.l.b16 %v262
        %v297 = vunpack.c.h.b16 %v262
        %v298 = vunpack.c.l.b16 %v263
        %v299 = vunpack.c.h.b16 %v263
        %v300 = vunpack.c.l.b16 %v264
        %v301 = vunpack.c.h.b16 %v264
        %v302 = vunpack.c.l.b16 %v265
        %v303 = vunpack.c.h.b16 %v265
        %v304 = vunpack.c.l.b16 %v266
        %v305 = vunpack.c.h.b16 %v266
        %v306 = vunpack.c.l.b16 %v267
        %v307 = vunpack.c.h.b16 %v267
        %v308 = vunpack.c.l.b16 %v268
        %v309 = vunpack.c.h.b16 %v268
        %v310 = vunpack.c.l.b16 %v269
        %v311 = vunpack.c.h.b16 %v269
        %v312 = vunpack.c.l.b16 %v270
        %v313 = vunpack.c.h.b16 %v270
        %v314 = vunpack.c.l.b16 %v271
        %v315 = vunpack.c.h.b16 %v271
        %v316 = vunpack.c.l.b16 %v272
        %v317 = vunpack.c.h.b16 %v272
        %v318 = vunpack.c.l.b16 %v273
        %v319 = vunpack.c.h.b16 %v273
        %v320 = vunpack.c.l.b16 %v274
        %v321 = vunpack.c.h.b16 %v274
        %v322 = vunpack.c.l.b16 %v275
        %v323 = vunpack.c.h.b16 %v275
        %v324 = vpack.c.b16 %v298, %v296
        %v325 = vpack.c.b16 %v299, %v297
        %v326 = vpack.c.b16 %v302, %v300
        %v327 = vpack.c.b16 %v303, %v301
        %v328 = vpack.c.b16 %v306, %v304
        %v329 = vpack.c.b16 %v307, %v305
        %v330 = vpack.c.b16 %v310, %v308
        %v331 = vpack.c.b16 %v311, %v309
        %v332 = vpack.c.b16 %v314, %v312
        %v333 = vpack.c.b16 %v315, %v313
        %v334 = vpack.c.b16 %v318, %v316
        %v335 = vpack.c.b16 %v319, %v317
        %v336 = vpack.c.b16 %v322, %v320
        %v337 = vpack.c.b16 %v323, %v321
        %vm350 = vcmask 883712
        %v352 = vsel %vm350, %v261, 0
        %vm354 = vcmask 1045504
        %v356 = vsel %vm354, %v336, 0
        %v359 = vsel %vm354, %v337, 0
        %361 = vmatprep.subr.bf16.mxu0 %v325
        %362 = vmatpush1.bf16.msra.mxu0 %v324
        %363 = vmatprep.subr.bf16.mxu0 %v327
        %364 = vmatpush1.bf16.msra.mxu0 %v326
        %365 = vmatprep.subr.bf16.mxu0 %v329
        %366 = vmatpush1.bf16.msra.mxu0 %v328
        %367 = vmatprep.subr.bf16.mxu0 %v331
        %368 = vmatpush1.bf16.msra.mxu0 %v330
        %369 = vmatprep.subr.bf16.mxu0 %v333
        %370 = vmatpush1.bf16.msra.mxu0 %v332
        %371 = vmatprep.subr.bf16.mxu0 %v335
        %372 = vmatpush1.bf16.msra.mxu0 %v334
        %373 = vmatprep.subr.bf16.mxu0 %v359
        %374 = vmatpush1.bf16.msra.mxu0 %v356
        %375 = vmatprep.subr.bf16.mxu0 0
        %376 = vmatpush1.bf16.msra.mxu0 0
        %377 = vmatprep.subr.bf16.mxu0 0
        %378 = vmatpush1.bf16.msra.mxu0 0
        %379 = vmatprep.subr.bf16.mxu0 0
        %380 = vmatpush1.bf16.msra.mxu0 0
        %381 = vmatprep.subr.bf16.mxu0 0
        %382 = vmatpush1.bf16.msra.mxu0 0
        %383 = vmatprep.subr.bf16.mxu0 0
        %384 = vmatpush1.bf16.msra.mxu0 0
        %385 = vmatprep.subr.bf16.mxu0 0
        %386 = vmatpush1.bf16.msra.mxu0 0
        %387 = vmatprep.subr.bf16.mxu0 0
        %388 = vmatpush1.bf16.msra.mxu0 0
        %389 = vmatprep.subr.bf16.mxu0 0
        %390 = vmatpush1.bf16.msra.mxu0 0
        %391 = vmatprep.subr.bf16.mxu0 0
        %392 = vmatpush1.bf16.msra.mxu0 0
        %393 = vmatprep.mubr.bf16.mxu0 0
        %394 = vmatmul.mubr.bf16.gmra.mrb[0].mxu0 %v352
        %v395 = vpop.f32.mrb[0].mxu0
        %v396 = vadd.f32 %v280, %v395
        %v397 = vpop.f32.mrb[0].mxu0
        %v398 = vadd.f32 %v280, %v397
        %v399 = vpop.f32.mrb[0].mxu0
        %v400 = vpop.f32.mrb[0].mxu0
        %401 = vdwg.mxu0
        %v402 = vmax.f32 %v396, 0.0
        %v403 = vmax.f32 %v398, 0.0
        %v406 = vcombine.low %v402, %v403
        %408 = vst [vmem:[%s258] sm:$0xff] %v406
        %s409 = smul.u32 2, %s14
        %p410 = scmp.lt.s32.totalorder %s409, 3
        %s411 = scalar_select %p410, %s409, 3
        %s412 = smul.addr %s411, 4
        %s413 = scalar_lea.vmem %s3, %s412
        // Predicated region
        $region71: #{_lambda_.8} parent=65 // pred_check
          %p414 = pneg %p100
        $region72: #{_lambda_.8} parent=65 // pred_check_branch
          %416 = sbr.rel (%p414) target = $region74
        $region73: #{_lambda_.8} parent=65 // pred_region
          %s417 = smul.u32 2, %s14
        $region74: #{_lambda_.8} parent=65 // pred_fallthru
          _
      $region66: #{_lambda_.8} parent=5 // pred_fallthru
        _
      %p418 = scmp.le.s32.totalorder 2, %s9
      // Predicated region
      $region75: #{_lambda_.8} parent=5 // pred_check
        %p419 = pneg %p418
      $region76: #{_lambda_.8} parent=5 // pred_check_branch
        %421 = sbr.rel (%p419) target = $region78
      $region77: #{_lambda_.8} parent=5 // pred_region
        %s422 = ssub.s32 %s9, 2
        // Predicated region
        $region79: #{_lambda_.8} parent=77 // pred_check
          %p423 = pneg %p106
        $region80: #{_lambda_.8} parent=77 // pred_check_branch
          %425 = sbr.rel (%p423) target = $region82
        $region81: #{_lambda_.8} parent=77 // pred_region
          %s426 = smul.u32 2, %s15
          %p427 = scmp.lt.s32.totalorder %s426, 3
          %s428 = scalar_select %p427, %s426, 3
          %s429 = smul.addr %s428, 4
          %s430 = scalar_lea.vmem %s3, %s429
        $region82: #{_lambda_.8} parent=77 // pred_fallthru
          _
      $region78: #{_lambda_.8} parent=5 // pred_fallthru
        _
    $region6: #{_lambda_.8} parent=1 // loop_footer
      %s13 = sadd.s32 1, %s9
    $region7: #{_lambda_.8} parent=1 // loop_footer_branch
      %8 = sbr.rel target = $region3
    $region8: #{_lambda_.8} parent=1 // loop_exit
      _

// kernel: _lambda_.9
$region0: #{_lambda_.9}
  #allocation0 [shape = 'u32[]', space=smem, size = 0x4, offset = 0x4, fixed_abs, tag = 'smem constant byte address 0x4 - core index']
  #allocation1 [shape = 'u32[144,128]{1,0:T(1,128)}', space=vmem, size = 0x12000, scoped, tag = 'internal scratch']
  %s0 = inlined_call_operand.vmem [shape: bf16[8,108], index: 0, kind: input, shape index: {}]
  %s1 = inlined_call_operand.vmem [shape: bf16[108,256], index: 1, kind: input, shape index: {}]
  %s2 = inlined_call_operand.vmem [shape: f32[8,1], index: 2, kind: input, shape index: {}]
  %s3 = inlined_call_operand.vmem [shape: f32[8,256], index: 3, kind: output, shape index: {}]
  %s4 = sld [smem:[#allocation0]]
  $region22: #{_lambda_.9} parent=0
    _
  %s6 = ssub.s32 1, %s4
  %s7 = scalar_select 0, %s6, %s4
  // Predicated region
  $region2: #{_lambda_.9} parent=0 // pred_check
    _
  $region3: #{_lambda_.9} parent=0 // pred_check_branch
    %9 = sbr.rel (0) target = $region5
  $region4: #{_lambda_.9} parent=0 // pred_region
    _
  $region5: #{_lambda_.9} parent=0 // pred_fallthru
    _
  // Predicated region
  $region6: #{_lambda_.9} parent=0 // pred_check
    _
  $region7: #{_lambda_.9} parent=0 // pred_check_branch
    %11 = sbr.rel (0) target = $region9
  $region8: #{_lambda_.9} parent=0 // pred_region
    _
  $region9: #{_lambda_.9} parent=0 // pred_fallthru
    _
  // Predicated region
  $region10: #{_lambda_.9} parent=0 // pred_check
    _
  $region11: #{_lambda_.9} parent=0 // pred_check_branch
    %13 = sbr.rel (0) target = $region13
  $region12: #{_lambda_.9} parent=0 // pred_region
    _
  $region13: #{_lambda_.9} parent=0 // pred_fallthru
    _
  %v15 = vld [vmem:[%s0] sm:$0xf]
  %v16 = vld [vmem:[%s1] sm:$0xff]
  %v17 = vld [vmem:[%s1 + $0x8] sm:$0xff]
  %v18 = vld [vmem:[%s1 + $0x10] sm:$0xff]
  %v19 = vld [vmem:[%s1 + $0x18] sm:$0xff]
  %v20 = vld [vmem:[%s1 + $0x20] sm:$0xff]
  %v21 = vld [vmem:[%s1 + $0x28] sm:$0xff]
  %v22 = vld [vmem:[%s1 + $0x30] sm:$0xff]
  %v23 = vld [vmem:[%s1 + $0x38] sm:$0xff]
  %v24 = vld [vmem:[%s1 + $0x40] sm:$0xff]
  %v25 = vld [vmem:[%s1 + $0x48] sm:$0xff]
  %v26 = vld [vmem:[%s1 + $0x50] sm:$0xff]
  %v27 = vld [vmem:[%s1 + $0x58] sm:$0xff]
  %v28 = vld [vmem:[%s1 + $0x60] sm:$0xff]
  %v29 = vld [vmem:[%s1 + $0x68] sm:$0x33]
  %v30 = vld [vmem:[%s2] sm:$0xff]
  %32 = vset.pattern.permute.xlu0 0
  %33 = vperm.xlu0 %32, %v30
  %v34 = vpop.permute.xlu0 %33
  %v50 = vunpack.c.l.b16 %v16
  %v51 = vunpack.c.h.b16 %v16
  %v52 = vunpack.c.l.b16 %v17
  %v53 = vunpack.c.h.b16 %v17
  %v54 = vunpack.c.l.b16 %v18
  %v55 = vunpack.c.h.b16 %v18
  %v56 = vunpack.c.l.b16 %v19
  %v57 = vunpack.c.h.b16 %v19
  %v58 = vunpack.c.l.b16 %v20
  %v59 = vunpack.c.h.b16 %v20
  %v60 = vunpack.c.l.b16 %v21
  %v61 = vunpack.c.h.b16 %v21
  %v62 = vunpack.c.l.b16 %v22
  %v63 = vunpack.c.h.b16 %v22
  %v64 = vunpack.c.l.b16 %v23
  %v65 = vunpack.c.h.b16 %v23
  %v66 = vunpack.c.l.b16 %v24
  %v67 = vunpack.c.h.b16 %v24
  %v68 = vunpack.c.l.b16 %v25
  %v69 = vunpack.c.h.b16 %v25
  %v70 = vunpack.c.l.b16 %v26
  %v71 = vunpack.c.h.b16 %v26
  %v72 = vunpack.c.l.b16 %v27
  %v73 = vunpack.c.h.b16 %v27
  %v74 = vunpack.c.l.b16 %v28
  %v75 = vunpack.c.h.b16 %v28
  %v76 = vunpack.c.l.b16 %v29
  %v77 = vunpack.c.h.b16 %v29
  %v78 = vpack.c.b16 %v52, %v50
  %v79 = vpack.c.b16 %v53, %v51
  %v80 = vpack.c.b16 %v56, %v54
  %v81 = vpack.c.b16 %v57, %v55
  %v82 = vpack.c.b16 %v60, %v58
  %v83 = vpack.c.b16 %v61, %v59
  %v84 = vpack.c.b16 %v64, %v62
  %v85 = vpack.c.b16 %v65, %v63
  %v86 = vpack.c.b16 %v68, %v66
  %v87 = vpack.c.b16 %v69, %v67
  %v88 = vpack.c.b16 %v72, %v70
  %v89 = vpack.c.b16 %v73, %v71
  %v90 = vpack.c.b16 %v76, %v74
  %v91 = vpack.c.b16 %v77, %v75
  %vm104 = vcmask 883712
  %v106 = vsel %vm104, %v15, 0
  %vm108 = vcmask 1045504
  %v110 = vsel %vm108, %v90, 0
  %v113 = vsel %vm108, %v91, 0
  %115 = vmatprep.subr.bf16.mxu0 %v79
  %116 = vmatpush1.bf16.msra.mxu0 %v78
  %117 = vmatprep.subr.bf16.mxu0 %v81
  %118 = vmatpush1.bf16.msra.mxu0 %v80
  %119 = vmatprep.subr.bf16.mxu0 %v83
  %120 = vmatpush1.bf16.msra.mxu0 %v82
  %121 = vmatprep.subr.bf16.mxu0 %v85
  %122 = vmatpush1.bf16.msra.mxu0 %v84
  %123 = vmatprep.subr.bf16.mxu0 %v87
  %124 = vmatpush1.bf16.msra.mxu0 %v86
  %125 = vmatprep.subr.bf16.mxu0 %v89
  %126 = vmatpush1.bf16.msra.mxu0 %v88
  %127 = vmatprep.subr.bf16.mxu0 %v113
  %128 = vmatpush1.bf16.msra.mxu0 %v110
  %129 = vmatprep.subr.bf16.mxu0 0
  %130 = vmatpush1.bf16.msra.mxu0 0
  %131 = vmatprep.subr.bf16.mxu0 0
  %132 = vmatpush1.bf16.msra.mxu0 0
  %133 = vmatprep.subr.bf16.mxu0 0
  %134 = vmatpush1.bf16.msra.mxu0 0
  %135 = vmatprep.subr.bf16.mxu0 0
  %136 = vmatpush1.bf16.msra.mxu0 0
  %137 = vmatprep.subr.bf16.mxu0 0
  %138 = vmatpush1.bf16.msra.mxu0 0
  %139 = vmatprep.subr.bf16.mxu0 0
  %140 = vmatpush1.bf16.msra.mxu0 0
  %141 = vmatprep.subr.bf16.mxu0 0
  %142 = vmatpush1.bf16.msra.mxu0 0
  %143 = vmatprep.subr.bf16.mxu0 0
  %144 = vmatpush1.bf16.msra.mxu0 0
  %145 = vmatprep.subr.bf16.mxu0 0
  %146 = vmatpush1.bf16.msra.mxu0 0
  %147 = vmatprep.mubr.bf16.mxu0 0
  %148 = vmatmul.mubr.bf16.gmra.mrb[0].mxu0 %v106
  %v149 = vpop.f32.mrb[0].mxu0
  %v150 = vadd.f32 %v34, %v149
  %v151 = vpop.f32.mrb[0].mxu0
  %v152 = vadd.f32 %v34, %v151
  %v153 = vpop.f32.mrb[0].mxu0
  %v154 = vpop.f32.mrb[0].mxu0
  %155 = vdwg.mxu0
  %156 = vst [vmem:[%s3] sm:$0xff] %v150
  %157 = vst [vmem:[%s3 + $0x8] sm:$0xff] %v152
  // Predicated region
  $region14: #{_lambda_.9} parent=0 // pred_check
    _
  $region15: #{_lambda_.9} parent=0 // pred_check_branch
    %159 = sbr.rel (0) target = $region17
  $region16: #{_lambda_.9} parent=0 // pred_region
    _
  $region17: #{_lambda_.9} parent=0 // pred_fallthru
    _
  // Predicated region
  $region18: #{_lambda_.9} parent=0 // pred_check
    _
  $region19: #{_lambda_.9} parent=0 // pred_check_branch
    %161 = sbr.rel (0) target = $region21
  $region20: #{_lambda_.9} parent=0 // pred_region
    _
  $region21: #{_lambda_.9} parent=0 // pred_fallthru
    _

// kernel: _lambda_.10
$region0: #{_lambda_.10}
  #allocation0 [shape = 'u32[]', space=smem, size = 0x4, offset = 0x4, fixed_abs, tag = 'smem constant byte address 0x4 - core index']
  #allocation1 [shape = 'u32[144,128]{1,0:T(1,128)}', space=vmem, size = 0x12000, scoped, tag = 'internal scratch']
  %s0 = inlined_call_operand.vmem [shape: bf16[8,216], index: 0, kind: input, shape index: {}]
  %s1 = inlined_call_operand.vmem [shape: bf16[216,256], index: 1, kind: input, shape index: {}]
  %s2 = inlined_call_operand.vmem [shape: f32[8,1], index: 2, kind: input, shape index: {}]
  %s3 = inlined_call_operand.vmem [shape: f32[8,256], index: 3, kind: output, shape index: {}]
  %s4 = sld [smem:[#allocation0]]
  $region22: #{_lambda_.10} parent=0
    _
  %s6 = ssub.s32 1, %s4
  %s7 = scalar_select 0, %s6, %s4
  // Predicated region
  $region2: #{_lambda_.10} parent=0 // pred_check
    _
  $region3: #{_lambda_.10} parent=0 // pred_check_branch
    %9 = sbr.rel (0) target = $region5
  $region4: #{_lambda_.10} parent=0 // pred_region
    _
  $region5: #{_lambda_.10} parent=0 // pred_fallthru
    _
  // Predicated region
  $region6: #{_lambda_.10} parent=0 // pred_check
    _
  $region7: #{_lambda_.10} parent=0 // pred_check_branch
    %11 = sbr.rel (0) target = $region9
  $region8: #{_lambda_.10} parent=0 // pred_region
    _
  $region9: #{_lambda_.10} parent=0 // pred_fallthru
    _
  // Predicated region
  $region10: #{_lambda_.10} parent=0 // pred_check
    _
  $region11: #{_lambda_.10} parent=0 // pred_check_branch
    %13 = sbr.rel (0) target = $region13
  $region12: #{_lambda_.10} parent=0 // pred_region
    _
  $region13: #{_lambda_.10} parent=0 // pred_fallthru
    _
  %v15 = vld [vmem:[%s0] sm:$0xff]
  %v16 = vld [vmem:[%s1] sm:$0xff]
  %v17 = vld [vmem:[%s1 + $0x8] sm:$0xff]
  %v18 = vld [vmem:[%s1 + $0x10] sm:$0xff]
  %v19 = vld [vmem:[%s1 + $0x18] sm:$0xff]
  %v20 = vld [vmem:[%s1 + $0x20] sm:$0xff]
  %v21 = vld [vmem:[%s1 + $0x28] sm:$0xff]
  %v22 = vld [vmem:[%s1 + $0x30] sm:$0xff]
  %v23 = vld [vmem:[%s1 + $0x38] sm:$0xff]
  %v24 = vld [vmem:[%s1 + $0x40] sm:$0xff]
  %v25 = vld [vmem:[%s1 + $0x48] sm:$0xff]
  %v26 = vld [vmem:[%s1 + $0x50] sm:$0xff]
  %v27 = vld [vmem:[%s1 + $0x58] sm:$0xff]
  %v28 = vld [vmem:[%s1 + $0x60] sm:$0xff]
  %v29 = vld [vmem:[%s1 + $0x68] sm:$0xff]
  %v30 = vld [vmem:[%s1 + $0x70] sm:$0xff]
  %v31 = vld [vmem:[%s1 + $0x78] sm:$0xff]
  %v32 = vld [vmem:[%s1 + $0x80] sm:$0xff]
  %v33 = vld [vmem:[%s1 + $0x88] sm:$0xff]
  %v34 = vld [vmem:[%s1 + $0x90] sm:$0xff]
  %v35 = vld [vmem:[%s1 + $0x98] sm:$0xff]
  %v36 = vld [vmem:[%s1 + $0xa0] sm:$0xff]
  %v37 = vld [vmem:[%s1 + $0xa8] sm:$0xff]
  %v38 = vld [vmem:[%s1 + $0xb0] sm:$0xff]
  %v39 = vld [vmem:[%s1 + $0xb8] sm:$0xff]
  %v40 = vld [vmem:[%s1 + $0xc0] sm:$0xff]
  %v41 = vld [vmem:[%s1 + $0xc8] sm:$0xff]
  %v42 = vld [vmem:[%s1 + $0xd0] sm:$0xff]
  %v43 = vld [vmem:[%s2] sm:$0xff]
  %45 = vset.pattern.permute.xlu0 0
  %46 = vperm.xlu0 %45, %v43
  %v47 = vpop.permute.xlu0 %46
  %v50 = vunpack.c.l.b16 %v15
  %v51 = vunpack.c.h.b16 %v15
  %v52 = vpack.c.b16 %v50, %v50
  %v53 = vpack.c.b16 %v51, %v51
  %v82 = vunpack.c.l.b16 %v16
  %v83 = vunpack.c.h.b16 %v16
  %v84 = vunpack.c.l.b16 %v17
  %v85 = vunpack.c.h.b16 %v17
  %v86 = vunpack.c.l.b16 %v18
  %v87 = vunpack.c.h.b16 %v18
  %v88 = vunpack.c.l.b16 %v19
  %v89 = vunpack.c.h.b16 %v19
  %v90 = vunpack.c.l.b16 %v20
  %v91 = vunpack.c.h.b16 %v20
  %v92 = vunpack.c.l.b16 %v21
  %v93 = vunpack.c.h.b16 %v21
  %v94 = vunpack.c.l.b16 %v22
  %v95 = vunpack.c.h.b16 %v22
  %v96 = vunpack.c.l.b16 %v23
  %v97 = vunpack.c.h.b16 %v23
  %v98 = vunpack.c.l.b16 %v24
  %v99 = vunpack.c.h.b16 %v24
  %v100 = vunpack.c.l.b16 %v25
  %v101 = vunpack.c.h.b16 %v25
  %v102 = vunpack.c.l.b16 %v26
  %v103 = vunpack.c.h.b16 %v26
  %v104 = vunpack.c.l.b16 %v27
  %v105 = vunpack.c.h.b16 %v27
  %v106 = vunpack.c.l.b16 %v28
  %v107 = vunpack.c.h.b16 %v28
  %v108 = vunpack.c.l.b16 %v29
  %v109 = vunpack.c.h.b16 %v29
  %v110 = vunpack.c.l.b16 %v30
  %v111 = vunpack.c.h.b16 %v30
  %v112 = vunpack.c.l.b16 %v31
  %v113 = vunpack.c.h.b16 %v31
  %v114 = vunpack.c.l.b16 %v32
  %v115 = vunpack.c.h.b16 %v32
  %v116 = vunpack.c.l.b16 %v33
  %v117 = vunpack.c.h.b16 %v33
  %v118 = vunpack.c.l.b16 %v34
  %v119 = vunpack.c.h.b16 %v34
  %v120 = vunpack.c.l.b16 %v35
  %v121 = vunpack.c.h.b16 %v35
  %v122 = vunpack.c.l.b16 %v36
  %v123 = vunpack.c.h.b16 %v36
  %v124 = vunpack.c.l.b16 %v37
  %v125 = vunpack.c.h.b16 %v37
  %v126 = vunpack.c.l.b16 %v38
  %v127 = vunpack.c.h.b16 %v38
  %v128 = vunpack.c.l.b16 %v39
  %v129 = vunpack.c.h.b16 %v39
  %v130 = vunpack.c.l.b16 %v40
  %v131 = vunpack.c.h.b16 %v40
  %v132 = vunpack.c.l.b16 %v41
  %v133 = vunpack.c.h.b16 %v41
  %v134 = vunpack.c.l.b16 %v42
  %v135 = vunpack.c.h.b16 %v42
  %v136 = vpack.c.b16 %v84, %v82
  %v137 = vpack.c.b16 %v85, %v83
  %v138 = vpack.c.b16 %v88, %v86
  %v139 = vpack.c.b16 %v89, %v87
  %v140 = vpack.c.b16 %v92, %v90
  %v141 = vpack.c.b16 %v93, %v91
  %v142 = vpack.c.b16 %v96, %v94
  %v143 = vpack.c.b16 %v97, %v95
  %v144 = vpack.c.b16 %v100, %v98
  %v145 = vpack.c.b16 %v101, %v99
  %v146 = vpack.c.b16 %v104, %v102
  %v147 = vpack.c.b16 %v105, %v103
  %v148 = vpack.c.b16 %v108, %v106
  %v149 = vpack.c.b16 %v109, %v107
  %v150 = vpack.c.b16 %v112, %v110
  %v151 = vpack.c.b16 %v113, %v111
  %v152 = vpack.c.b16 %v116, %v114
  %v153 = vpack.c.b16 %v117, %v115
  %v154 = vpack.c.b16 %v120, %v118
  %v155 = vpack.c.b16 %v121, %v119
  %v156 = vpack.c.b16 %v124, %v122
  %v157 = vpack.c.b16 %v125, %v123
  %v158 = vpack.c.b16 %v128, %v126
  %v159 = vpack.c.b16 %v129, %v127
  %v160 = vpack.c.b16 %v132, %v130
  %v161 = vpack.c.b16 %v133, %v131
  %v162 = vpack.c.b16 %v134, %v134
  %v163 = vpack.c.b16 %v135, %v135
  %vm190 = vcmask 719872
  %v192 = vsel %vm190, %v53, 0
  %vm194 = vcmask 1043456
  %v196 = vsel %vm194, %v162, 0
  %v199 = vsel %vm194, %v163, 0
  %201 = vmatprep.subr.bf16.mxu0 %v137
  %202 = vmatpush1.bf16.msra.mxu0 %v136
  %203 = vmatprep.subr.bf16.mxu0 %v139
  %204 = vmatpush1.bf16.msra.mxu0 %v138
  %205 = vmatprep.subr.bf16.mxu0 %v141
  %206 = vmatpush1.bf16.msra.mxu0 %v140
  %207 = vmatprep.subr.bf16.mxu0 %v143
  %208 = vmatpush1.bf16.msra.mxu0 %v142
  %209 = vmatprep.subr.bf16.mxu0 %v145
  %210 = vmatpush1.bf16.msra.mxu0 %v144
  %211 = vmatprep.subr.bf16.mxu0 %v147
  %212 = vmatpush1.bf16.msra.mxu0 %v146
  %213 = vmatprep.subr.bf16.mxu0 %v149
  %214 = vmatpush1.bf16.msra.mxu0 %v148
  %215 = vmatprep.subr.bf16.mxu0 %v151
  %216 = vmatpush1.bf16.msra.mxu0 %v150
  %217 = vmatprep.subr.bf16.mxu0 %v153
  %218 = vmatpush1.bf16.msra.mxu0 %v152
  %219 = vmatprep.subr.bf16.mxu0 %v155
  %220 = vmatpush1.bf16.msra.mxu0 %v154
  %221 = vmatprep.subr.bf16.mxu0 %v157
  %222 = vmatpush1.bf16.msra.mxu0 %v156
  %223 = vmatprep.subr.bf16.mxu0 %v159
  %224 = vmatpush1.bf16.msra.mxu0 %v158
  %225 = vmatprep.subr.bf16.mxu0 %v161
  %226 = vmatpush1.bf16.msra.mxu0 %v160
  %227 = vmatprep.subr.bf16.mxu0 %v199
  %228 = vmatpush1.bf16.msra.mxu0 %v196
  %229 = vmatprep.subr.bf16.mxu0 0
  %230 = vmatpush1.bf16.msra.mxu0 0
  %231 = vmatprep.subr.bf16.mxu0 0
  %232 = vmatpush1.bf16.msra.mxu0 0
  %233 = vmatprep.mubr.bf16.mxu0 %v192
  %234 = vmatmul.mubr.bf16.gmra.mrb[0].mxu0 %v52
  %v235 = vpop.f32.mrb[0].mxu0
  %v236 = vadd.f32 %v47, %v235
  %v237 = vpop.f32.mrb[0].mxu0
  %v238 = vadd.f32 %v47, %v237
  %v239 = vpop.f32.mrb[0].mxu0
  %v240 = vpop.f32.mrb[0].mxu0
  %241 = vdwg.mxu0
  %v242 = vmax.f32 %v236, 0.0
  %v243 = vmax.f32 %v238, 0.0
  %244 = vst [vmem:[%s3] sm:$0xff] %v242
  %245 = vst [vmem:[%s3 + $0x8] sm:$0xff] %v243
  // Predicated region
  $region14: #{_lambda_.10} parent=0 // pred_check
    _
  $region15: #{_lambda_.10} parent=0 // pred_check_branch
    %247 = sbr.rel (0) target = $region17
  $region16: #{_lambda_.10} parent=0 // pred_region
    _
  $region17: #{_lambda_.10} parent=0 // pred_fallthru
    _
  // Predicated region
  $region18: #{_lambda_.10} parent=0 // pred_check
    _
  $region19: #{_lambda_.10} parent=0 // pred_check_branch
    %249 = sbr.rel (0) target = $region21
  $region20: #{_lambda_.10} parent=0 // pred_region
    _
  $region21: #{_lambda_.10} parent=0 // pred_fallthru
    _

// kernel: _lambda_.11
$region0: #{_lambda_.11}
  #allocation0 [shape = 'u32[]', space=smem, size = 0x4, offset = 0x4, fixed_abs, tag = 'smem constant byte address 0x4 - core index']
  #allocation1 [shape = 'u32[144,128]{1,0:T(1,128)}', space=vmem, size = 0x12000, scoped, tag = 'internal scratch']
  %s0 = inlined_call_operand.vmem [shape: bf16[4,216], index: 0, kind: input, shape index: {}]
  %s1 = inlined_call_operand.vmem [shape: bf16[216,512], index: 1, kind: input, shape index: {}]
  %s2 = inlined_call_operand.vmem [shape: f32[4,1], index: 2, kind: input, shape index: {}]
  %s3 = inlined_call_operand.vmem [shape: f32[4,512], index: 3, kind: output, shape index: {}]
  %s4 = sld [smem:[#allocation0]]
  $region83: #{_lambda_.11} parent=0
    _
  %s6 = ssub.s32 1, %s4
  %s7 = scalar_select 0, %s6, %s4
  $region1: #{_lambda_.11} parent=0
    #allocation2 [shape = 'u8[221184]{0}', space=vmem, size = 0x36000, scoped, tag = 'input window, operand 1']
    loop: start=0, step=1, limit=4
    $region2: #{_lambda_.11} parent=1 // loop_pre_header
      _
    $region3: #{_lambda_.11} parent=1 // loop_header
      %s9 = sphi 0, %s13
      %p10 = scmp.ge.s32.totalorder %s9, 4
      %s17 = sphi 0, %s17
      %s19 = sphi 0, %s17
      %s20 = sphi 0, %s19
      %s34 = sphi 0, %s20
      %s40 = sphi 0, %s42
      %s43 = sphi 0, %s40
      %s44 = sphi 0, %s43
      %s60 = sphi 0, %s44
      %s64 = sphi 0, %s64
      %s66 = sphi 0, %s64
      %s67 = sphi 0, %s66
      %s81 = sphi 0, %s67
      %s87 = sphi 0, %s89
      %s90 = sphi 0, %s87
      %s91 = sphi 0, %s90
      %s107 = sphi 0, %s91
    $region4: #{_lambda_.11} parent=1 // loop_header_branch
      %12 = sbr.rel (%p10) target = $region8
    $region5: #{_lambda_.11} parent=1 // loop_body
      %s14 = ssub.s32 %s9, 1
      %s15 = ssub.s32 %s9, 2
      %s16 = sadd.s32 %s9, 1
      %s18 = sadd.s32 %s17, 1
      %p21 = scmp.eq.s32.totalorder %s9, 1
      %p22 = scmp.ne.s32.totalorder %s17, %s19
      %p23 = scmp.eq.s32.totalorder %s9, 0
      %p24 = por %p22, %p23
      %p25 = scmp.ne.s32.totalorder %s17, %s19
      %p26 = scmp.eq.s32.totalorder %s14, 1
      %p27 = por %p25, %p26
      %p28 = scmp.ne.s32.totalorder %s19, %s20
      %p29 = scmp.eq.s32.totalorder %s14, 0
      %p30 = por %p28, %p29
      %p31 = scmp.ne.s32.totalorder %s19, %s20
      %p32 = scmp.eq.s32.totalorder %s15, 1
      %p33 = por %p31, %p32
      %p35 = scmp.ne.s32.totalorder %s20, %s34
      %p36 = scmp.eq.s32.totalorder %s15, 0
      %p37 = por %p35, %p36
      %s38 = ssub.s32 %s9, %s16
      %p39 = scmp.eq.s32.totalorder %s38, 0
      %s41 = sadd.s32 %s40, 1
      %s42 = scalar_select %p39, %s40, %s41
      %p45 = pneg %p39
      %p46 = scmp.eq.s32.totalorder %s9, 1
      %p47 = por %p45, %p46
      %p48 = scmp.ne.s32.totalorder %s40, %s43
      %p49 = scmp.eq.s32.totalorder %s9, 0
      %p50 = por %p48, %p49
      %p51 = scmp.ne.s32.totalorder %s40, %s43
      %p52 = scmp.eq.s32.totalorder %s14, 1
      %p53 = por %p51, %p52
      %p54 = scmp.ne.s32.totalorder %s43, %s44
      %p55 = scmp.eq.s32.totalorder %s14, 0
      %p56 = por %p54, %p55
      %p57 = scmp.ne.s32.totalorder %s43, %s44
      %p58 = scmp.eq.s32.totalorder %s15, 1
      %p59 = por %p57, %p58
      %p61 = scmp.ne.s32.totalorder %s44, %s60
      %p62 = scmp.eq.s32.totalorder %s15, 0
      %p63 = por %p61, %p62
      %s65 = sadd.s32 %s64, 1
      %p68 = scmp.eq.s32.totalorder %s9, 1
      %p69 = scmp.ne.s32.totalorder %s64, %s66
      %p70 = scmp.eq.s32.totalorder %s9, 0
      %p71 = por %p69, %p70
      %p72 = scmp.ne.s32.totalorder %s64, %s66
      %p73 = scmp.eq.s32.totalorder %s14, 1
      %p74 = por %p72, %p73
      %p75 = scmp.ne.s32.totalorder %s66, %s67
      %p76 = scmp.eq.s32.totalorder %s14, 0
      %p77 = por %p75, %p76
      %p78 = scmp.ne.s32.totalorder %s66, %s67
      %p79 = scmp.eq.s32.totalorder %s15, 1
      %p80 = por %p78, %p79
      %p82 = scmp.ne.s32.totalorder %s67, %s81
      %p83 = scmp.eq.s32.totalorder %s15, 0
      %p84 = por %p82, %p83
      %s85 = ssub.s32 %s9, %s16
      %p86 = scmp.eq.s32.totalorder %s85, 0
      %s88 = sadd.s32 %s87, 1
      %s89 = scalar_select %p86, %s87, %s88
      %p92 = pneg %p86
      %p93 = scmp.eq.s32.totalorder %s9, 1
      %p94 = por %p92, %p93
      %p95 = scmp.ne.s32.totalorder %s87, %s90
      %p96 = scmp.eq.s32.totalorder %s9, 0
      %p97 = por %p95, %p96
      %p98 = scmp.ne.s32.totalorder %s87, %s90
      %p99 = scmp.eq.s32.totalorder %s14, 1
      %p100 = por %p98, %p99
      %p101 = scmp.ne.s32.totalorder %s90, %s91
      %p102 = scmp.eq.s32.totalorder %s14, 0
      %p103 = por %p101, %p102
      %p104 = scmp.ne.s32.totalorder %s90, %s91
      %p105 = scmp.eq.s32.totalorder %s15, 1
      %p106 = por %p104, %p105
      %p108 = scmp.ne.s32.totalorder %s91, %s107
      %p109 = scmp.eq.s32.totalorder %s15, 0
      %p110 = por %p108, %p109
      %p111 = scmp.le.s32.totalorder 1, %s9
      %p112 = scmp.lt.s32.totalorder %s9, 3
      %p113 = pnand %p111, %p112
      %p114 = pneg %p113
      // Predicated region
      $region9: #{_lambda_.11} parent=5 // pred_check
        _
      $region10: #{_lambda_.11} parent=5 // pred_check_branch
        %116 = sbr.rel (%p113) target = $region12
      $region11: #{_lambda_.11} parent=5 // pred_region
        %s117 = ssub.s32 %s9, 1
        // Predicated region
        $region13: #{_lambda_.11} parent=11 // pred_check
          %p118 = pneg %p30
        $region14: #{_lambda_.11} parent=11 // pred_check_branch
          %120 = sbr.rel (%p118) target = $region16
        $region15: #{_lambda_.11} parent=11 // pred_region
          _
        $region16: #{_lambda_.11} parent=11 // pred_fallthru
          _
        // Predicated region
        $region17: #{_lambda_.11} parent=11 // pred_check
          %p121 = pneg %p77
        $region18: #{_lambda_.11} parent=11 // pred_check_branch
          %123 = sbr.rel (%p121) target = $region20
        $region19: #{_lambda_.11} parent=11 // pred_region
          _
        $region20: #{_lambda_.11} parent=11 // pred_fallthru
          _
      $region12: #{_lambda_.11} parent=5 // pred_fallthru
        _
      %p124 = scmp.lt.s32.totalorder %s9, 2
      // Predicated region
      $region21: #{_lambda_.11} parent=5 // pred_check
        %p125 = pneg %p124
      $region22: #{_lambda_.11} parent=5 // pred_check_branch
        %127 = sbr.rel (%p125) target = $region24
      $region23: #{_lambda_.11} parent=5 // pred_region
        // Predicated region
        $region25: #{_lambda_.11} parent=23 // pred_check
          %p128 = pneg %p50
        $region26: #{_lambda_.11} parent=23 // pred_check_branch
          %130 = sbr.rel (%p128) target = $region28
        $region27: #{_lambda_.11} parent=23 // pred_region
          %s131 = sand.u32 %s40, 1
          %s132 = sand.u32 %s40, 1
          %s133 = smul.addr %s132, 216
          %s134 = scalar_lea.vmem [#allocation2], %s133
          %s135 = smul.u32 2, %s9
          %s136 = smul.addr %s135, 4
          %s137 = scalar_lea.vmem %s1, %s136
          // Predicated region
          $region29: #{_lambda_.11} parent=27 // pred_check
            _
          $region30: #{_lambda_.11} parent=27 // pred_check_branch
            %139 = sbr.rel (0) target = $region32
          $region31: #{_lambda_.11} parent=27 // pred_region
            // Predicated region
            $region33: #{_lambda_.11} parent=31 // pred_check
              _
            $region34: #{_lambda_.11} parent=31 // pred_check_branch
              %141 = sbr.rel (0) target = $region36
            $region35: #{_lambda_.11} parent=31 // pred_region
              // Predicated region
              $region48: #{_lambda_.11} parent=35 // pred_check
                _
              $region49: #{_lambda_.11} parent=35 // pred_check_branch
                %208 = sbr.rel (0) target = $region51
              $region50: #{_lambda_.11} parent=35 // pred_region
                loop: start=0, step=1, limit=1
                $region52: #{_lambda_.11} parent=50 // loop_pre_header
                  _
                $region53: #{_lambda_.11} parent=50 // loop_header
                  %s210 = sphi 0, %s214
                  %p211 = scmp.ge.s32.totalorder %s210, 1
                  %s215 = sphi %s137, %s137
                  %s216 = sphi %s134, %s134
                $region54: #{_lambda_.11} parent=50 // loop_header_branch
                  %213 = sbr.rel (%p211) target = $region58
                $region55: #{_lambda_.11} parent=50 // loop_body
                  %v217 = vld [vmem:[%s215] sm:$0xff]
                  %218 = vst [vmem:[%s216] sm:$0xff] %v217
                  %v219 = vld [vmem:[%s215 + $0x10] sm:$0xff]
                  %220 = vst [vmem:[%s216 + $0x8] sm:$0xff] %v219
                  %v221 = vld [vmem:[%s215 + $0x20] sm:$0xff]
                  %222 = vst [vmem:[%s216 + $0x10] sm:$0xff] %v221
                  %v223 = vld [vmem:[%s215 + $0x30] sm:$0xff]
                  %224 = vst [vmem:[%s216 + $0x18] sm:$0xff] %v223
                  %v225 = vld [vmem:[%s215 + $0x40] sm:$0xff]
                  %226 = vst [vmem:[%s216 + $0x20] sm:$0xff] %v225
                  %v227 = vld [vmem:[%s215 + $0x50] sm:$0xff]
                  %228 = vst [vmem:[%s216 + $0x28] sm:$0xff] %v227
                  %v229 = vld [vmem:[%s215 + $0x60] sm:$0xff]
                  %230 = vst [vmem:[%s216 + $0x30] sm:$0xff] %v229
                  %v231 = vld [vmem:[%s215 + $0x70] sm:$0xff]
                  %232 = vst [vmem:[%s216 + $0x38] sm:$0xff] %v231
                  %v233 = vld [vmem:[%s215 + $0x80] sm:$0xff]
                  %234 = vst [vmem:[%s216 + $0x40] sm:$0xff] %v233
                  %v235 = vld [vmem:[%s215 + $0x90] sm:$0xff]
                  %236 = vst [vmem:[%s216 + $0x48] sm:$0xff] %v235
                  %v237 = vld [vmem:[%s215 + $0xa0] sm:$0xff]
                  %238 = vst [vmem:[%s216 + $0x50] sm:$0xff] %v237
                  %v239 = vld [vmem:[%s215 + $0xb0] sm:$0xff]
                  %240 = vst [vmem:[%s216 + $0x58] sm:$0xff] %v239
                  %v241 = vld [vmem:[%s215 + $0xc0] sm:$0xff]
                  %242 = vst [vmem:[%s216 + $0x60] sm:$0xff] %v241
                  %v243 = vld [vmem:[%s215 + $0xd0] sm:$0xff]
                  %244 = vst [vmem:[%s216 + $0x68] sm:$0xff] %v243
                  %v245 = vld [vmem:[%s215 + $0xe0] sm:$0xff]
                  %246 = vst [vmem:[%s216 + $0x70] sm:$0xff] %v245
                  %v247 = vld [vmem:[%s215 + $0xf0] sm:$0xff]
                  %248 = vst [vmem:[%s216 + $0x78] sm:$0xff] %v247
                  %v249 = vld [vmem:[%s215 + $0x100] sm:$0xff]
                  %250 = vst [vmem:[%s216 + $0x80] sm:$0xff] %v249
                  %v251 = vld [vmem:[%s215 + $0x110] sm:$0xff]
                  %252 = vst [vmem:[%s216 + $0x88] sm:$0xff] %v251
                  %v253 = vld [vmem:[%s215 + $0x120] sm:$0xff]
                  %254 = vst [vmem:[%s216 + $0x90] sm:$0xff] %v253
                  %v255 = vld [vmem:[%s215 + $0x130] sm:$0xff]
                  %256 = vst [vmem:[%s216 + $0x98] sm:$0xff] %v255
                  %v257 = vld [vmem:[%s215 + $0x140] sm:$0xff]
                  %258 = vst [vmem:[%s216 + $0xa0] sm:$0xff] %v257
                  %v259 = vld [vmem:[%s215 + $0x150] sm:$0xff]
                  %260 = vst [vmem:[%s216 + $0xa8] sm:$0xff] %v259
                  %v261 = vld [vmem:[%s215 + $0x160] sm:$0xff]
                  %262 = vst [vmem:[%s216 + $0xb0] sm:$0xff] %v261
                  %v263 = vld [vmem:[%s215 + $0x170] sm:$0xff]
                  %264 = vst [vmem:[%s216 + $0xb8] sm:$0xff] %v263
                  %v265 = vld [vmem:[%s215 + $0x180] sm:$0xff]
                  %266 = vst [vmem:[%s216 + $0xc0] sm:$0xff] %v265
                  %v267 = vld [vmem:[%s215 + $0x190] sm:$0xff]
                  %268 = vst [vmem:[%s216 + $0xc8] sm:$0xff] %v267
                  %v269 = vld [vmem:[%s215 + $0x1a0] sm:$0xff]
                  %270 = vst [vmem:[%s216 + $0xd0] sm:$0xff] %v269
                $region56: #{_lambda_.11} parent=50 // loop_footer
                  %s214 = sadd.s32 1, %s210
                $region57: #{_lambda_.11} parent=50 // loop_footer_branch
                  %209 = sbr.rel target = $region53
                $region58: #{_lambda_.11} parent=50 // loop_exit
                  _
              $region51: #{_lambda_.11} parent=35 // pred_fallthru
                _
              // Predicated region
              $region59: #{_lambda_.11} parent=35 // pred_check
                _
              $region60: #{_lambda_.11} parent=35 // pred_check_branch
                %272 = sbr.rel target = $region62
              $region61: #{_lambda_.11} parent=35 // pred_region
                _
              $region62: #{_lambda_.11} parent=35 // pred_fallthru
                _
            $region36: #{_lambda_.11} parent=31 // pred_fallthru
              _
            // Predicated region
            $region37: #{_lambda_.11} parent=31 // pred_check
              _
            $region38: #{_lambda_.11} parent=31 // pred_check_branch
              %143 = sbr.rel target = $region40
            $region39: #{_lambda_.11} parent=31 // pred_region
              loop: start=0, step=1, limit=1
              $region41: #{_lambda_.11} parent=39 // loop_pre_header
                _
              $region42: #{_lambda_.11} parent=39 // loop_header
                %s146 = sphi 0, %s150
                %p147 = scmp.ge.s32.totalorder %s146, 1
                %s151 = sphi %s137, %s137
                %s152 = sphi %s134, %s134
              $region43: #{_lambda_.11} parent=39 // loop_header_branch
                %149 = sbr.rel (%p147) target = $region47
              $region44: #{_lambda_.11} parent=39 // loop_body
                %v153 = vld [vmem:[%s151] sm:$0xff]
                %154 = vst [vmem:[%s152] sm:$0xff] %v153
                %v155 = vld [vmem:[%s151 + $0x10] sm:$0xff]
                %156 = vst [vmem:[%s152 + $0x8] sm:$0xff] %v155
                %v157 = vld [vmem:[%s151 + $0x20] sm:$0xff]
                %158 = vst [vmem:[%s152 + $0x10] sm:$0xff] %v157
                %v159 = vld [vmem:[%s151 + $0x30] sm:$0xff]
                %160 = vst [vmem:[%s152 + $0x18] sm:$0xff] %v159
                %v161 = vld [vmem:[%s151 + $0x40] sm:$0xff]
                %162 = vst [vmem:[%s152 + $0x20] sm:$0xff] %v161
                %v163 = vld [vmem:[%s151 + $0x50] sm:$0xff]
                %164 = vst [vmem:[%s152 + $0x28] sm:$0xff] %v163
                %v165 = vld [vmem:[%s151 + $0x60] sm:$0xff]
                %166 = vst [vmem:[%s152 + $0x30] sm:$0xff] %v165
                %v167 = vld [vmem:[%s151 + $0x70] sm:$0xff]
                %168 = vst [vmem:[%s152 + $0x38] sm:$0xff] %v167
                %v169 = vld [vmem:[%s151 + $0x80] sm:$0xff]
                %170 = vst [vmem:[%s152 + $0x40] sm:$0xff] %v169
                %v171 = vld [vmem:[%s151 + $0x90] sm:$0xff]
                %172 = vst [vmem:[%s152 + $0x48] sm:$0xff] %v171
                %v173 = vld [vmem:[%s151 + $0xa0] sm:$0xff]
                %174 = vst [vmem:[%s152 + $0x50] sm:$0xff] %v173
                %v175 = vld [vmem:[%s151 + $0xb0] sm:$0xff]
                %176 = vst [vmem:[%s152 + $0x58] sm:$0xff] %v175
                %v177 = vld [vmem:[%s151 + $0xc0] sm:$0xff]
                %178 = vst [vmem:[%s152 + $0x60] sm:$0xff] %v177
                %v179 = vld [vmem:[%s151 + $0xd0] sm:$0xff]
                %180 = vst [vmem:[%s152 + $0x68] sm:$0xff] %v179
                %v181 = vld [vmem:[%s151 + $0xe0] sm:$0xff]
                %182 = vst [vmem:[%s152 + $0x70] sm:$0xff] %v181
                %v183 = vld [vmem:[%s151 + $0xf0] sm:$0xff]
                %184 = vst [vmem:[%s152 + $0x78] sm:$0xff] %v183
                %v185 = vld [vmem:[%s151 + $0x100] sm:$0xff]
                %186 = vst [vmem:[%s152 + $0x80] sm:$0xff] %v185
                %v187 = vld [vmem:[%s151 + $0x110] sm:$0xff]
                %188 = vst [vmem:[%s152 + $0x88] sm:$0xff] %v187
                %v189 = vld [vmem:[%s151 + $0x120] sm:$0xff]
                %190 = vst [vmem:[%s152 + $0x90] sm:$0xff] %v189
                %v191 = vld [vmem:[%s151 + $0x130] sm:$0xff]
                %192 = vst [vmem:[%s152 + $0x98] sm:$0xff] %v191
                %v193 = vld [vmem:[%s151 + $0x140] sm:$0xff]
                %194 = vst [vmem:[%s152 + $0xa0] sm:$0xff] %v193
                %v195 = vld [vmem:[%s151 + $0x150] sm:$0xff]
                %196 = vst [vmem:[%s152 + $0xa8] sm:$0xff] %v195
                %v197 = vld [vmem:[%s151 + $0x160] sm:$0xff]
                %198 = vst [vmem:[%s152 + $0xb0] sm:$0xff] %v197
                %v199 = vld [vmem:[%s151 + $0x170] sm:$0xff]
                %200 = vst [vmem:[%s152 + $0xb8] sm:$0xff] %v199
                %v201 = vld [vmem:[%s151 + $0x180] sm:$0xff]
                %202 = vst [vmem:[%s152 + $0xc0] sm:$0xff] %v201
                %v203 = vld [vmem:[%s151 + $0x190] sm:$0xff]
                %204 = vst [vmem:[%s152 + $0xc8] sm:$0xff] %v203
                %v205 = vld [vmem:[%s151 + $0x1a0] sm:$0xff]
                %206 = vst [vmem:[%s152 + $0xd0] sm:$0xff] %v205
              $region45: #{_lambda_.11} parent=39 // loop_footer
                %s150 = sadd.s32 1, %s146
              $region46: #{_lambda_.11} parent=39 // loop_footer_branch
                %145 = sbr.rel target = $region42
              $region47: #{_lambda_.11} parent=39 // loop_exit
                _
            $region40: #{_lambda_.11} parent=31 // pred_fallthru
              _
          $region32: #{_lambda_.11} parent=27 // pred_fallthru
            _
          %273 = vnop
        $region28: #{_lambda_.11} parent=23 // pred_fallthru
          _
      $region24: #{_lambda_.11} parent=5 // pred_fallthru
        _
      %p274 = scmp.le.s32.totalorder 1, %s9
      %p275 = scmp.lt.s32.totalorder %s9, 3
      %p276 = pnand %p274, %p275
      %p277 = pneg %p276
      // Predicated region
      $region63: #{_lambda_.11} parent=5 // pred_check
        _
      $region64: #{_lambda_.11} parent=5 // pred_check_branch
        %279 = sbr.rel (%p276) target = $region66
      $region65: #{_lambda_.11} parent=5 // pred_region
        %s280 = ssub.s32 %s9, 1
        %s281 = sand.u32 %s43, 1
        %s282 = sand.u32 %s43, 1
        %s283 = smul.addr %s282, 216
        %s284 = scalar_lea.vmem [#allocation2], %s283
        // Predicated region
        $region67: #{_lambda_.11} parent=65 // pred_check
          %p285 = pneg %p56
        $region68: #{_lambda_.11} parent=65 // pred_check_branch
          %287 = sbr.rel (%p285) target = $region70
        $region69: #{_lambda_.11} parent=65 // pred_region
          _
        $region70: #{_lambda_.11} parent=65 // pred_fallthru
          _
        %p288 = pneg %p30
        %p289 = pneg %p27
        %s290 = sand.u32 %s43, 1
        %s291 = sand.u32 %s43, 1
        %s292 = smul.addr %s291, 216
        %s293 = scalar_lea.vmem [#allocation2], %s292
        %p294 = pneg %p56
        %p295 = pneg %p53
        %p296 = pneg %p77
        %p297 = pneg %p74
        %p298 = pneg %p103
        %p299 = pneg %p100
        %s300 = smul.u32 2, %s14
        %p301 = scmp.lt.s32.totalorder %s300, 3
        %s302 = scalar_select %p301, %s300, 3
        %s303 = smul.addr %s302, 4
        %s304 = scalar_lea.vmem %s3, %s303
        %s305 = smul.u32 2, %s14
        %s306 = smul.u32 2, %s14
        %p307 = scmp.lt.s32.totalorder %s306, 3
        %s308 = scalar_select %p307, %s306, 3
        %s309 = smul.addr %s308, 4
        %s310 = scalar_lea.vmem %s3, %s309
        %s311 = smul.u32 2, %s14
        %v313 = vld [vmem:[%s0] sm:$0xf]
        %v314 = vld [vmem:[%s284] sm:$0xff]
        %v315 = vld [vmem:[%s284 + $0x8] sm:$0xff]
        %v316 = vld [vmem:[%s284 + $0x10] sm:$0xff]
        %v317 = vld [vmem:[%s284 + $0x18] sm:$0xff]
        %v318 = vld [vmem:[%s284 + $0x20] sm:$0xff]
        %v319 = vld [vmem:[%s284 + $0x28] sm:$0xff]
        %v320 = vld [vmem:[%s284 + $0x30] sm:$0xff]
        %v321 = vld [vmem:[%s284 + $0x38] sm:$0xff]
        %v322 = vld [vmem:[%s284 + $0x40] sm:$0xff]
        %v323 = vld [vmem:[%s284 + $0x48] sm:$0xff]
        %v324 = vld [vmem:[%s284 + $0x50] sm:$0xff]
        %v325 = vld [vmem:[%s284 + $0x58] sm:$0xff]
        %v326 = vld [vmem:[%s284 + $0x60] sm:$0xff]
        %v327 = vld [vmem:[%s284 + $0x68] sm:$0xff]
        %v328 = vld [vmem:[%s284 + $0x70] sm:$0xff]
        %v329 = vld [vmem:[%s284 + $0x78] sm:$0xff]
        %v330 = vld [vmem:[%s284 + $0x80] sm:$0xff]
        %v331 = vld [vmem:[%s284 + $0x88] sm:$0xff]
        %v332 = vld [vmem:[%s284 + $0x90] sm:$0xff]
        %v333 = vld [vmem:[%s284 + $0x98] sm:$0xff]
        %v334 = vld [vmem:[%s284 + $0xa0] sm:$0xff]
        %v335 = vld [vmem:[%s284 + $0xa8] sm:$0xff]
        %v336 = vld [vmem:[%s284 + $0xb0] sm:$0xff]
        %v337 = vld [vmem:[%s284 + $0xb8] sm:$0xff]
        %v338 = vld [vmem:[%s284 + $0xc0] sm:$0xff]
        %v339 = vld [vmem:[%s284 + $0xc8] sm:$0xff]
        %v340 = vld [vmem:[%s284 + $0xd0] sm:$0xff]
        %v341 = vld [vmem:[%s2] sm:$0xf]
        %343 = vset.pattern.permute.xlu0 0
        %344 = vperm.xlu0 %343, %v341
        %v345 = vpop.permute.xlu0 %344
        %v349 = vunpack.c.l.s4 1983009808
        %v350 = vunpack.c.0.s8 %v349
        %v351 = vlaneseq
        %v352 = vshrl.u32 %v351, 7
        %v353 = vsub.s32 %v350, %v352
        %v354 = vrot.slane %v313, %v353
        %v355 = vcombine.high %v354, %v354
        %v384 = vunpack.c.l.b16 %v314
        %v385 = vunpack.c.h.b16 %v314
        %v386 = vunpack.c.l.b16 %v315
        %v387 = vunpack.c.h.b16 %v315
        %v388 = vunpack.c.l.b16 %v316
        %v389 = vunpack.c.h.b16 %v316
        %v390 = vunpack.c.l.b16 %v317
        %v391 = vunpack.c.h.b16 %v317
        %v392 = vunpack.c.l.b16 %v318
        %v393 = vunpack.c.h.b16 %v318
        %v394 = vunpack.c.l.b16 %v319
        %v395 = vunpack.c.h.b16 %v319
        %v396 = vunpack.c.l.b16 %v320
        %v397 = vunpack.c.h.b16 %v320
        %v398 = vunpack.c.l.b16 %v321
        %v399 = vunpack.c.h.b16 %v321
        %v400 = vunpack.c.l.b16 %v322
        %v401 = vunpack.c.h.b16 %v322
        %v402 = vunpack.c.l.b16 %v323
        %v403 = vunpack.c.h.b16 %v323
        %v404 = vunpack.c.l.b16 %v324
        %v405 = vunpack.c.h.b16 %v324
        %v406 = vunpack.c.l.b16 %v325
        %v407 = vunpack.c.h.b16 %v325
        %v408 = vunpack.c.l.b16 %v326
        %v409 = vunpack.c.h.b16 %v326
        %v410 = vunpack.c.l.b16 %v327
        %v411 = vunpack.c.h.b16 %v327
        %v412 = vunpack.c.l.b16 %v328
        %v413 = vunpack.c.h.b16 %v328
        %v414 = vunpack.c.l.b16 %v329
        %v415 = vunpack.c.h.b16 %v329
        %v416 = vunpack.c.l.b16 %v330
        %v417 = vunpack.c.h.b16 %v330
        %v418 = vunpack.c.l.b16 %v331
        %v419 = vunpack.c.h.b16 %v331
        %v420 = vunpack.c.l.b16 %v332
        %v421 = vunpack.c.h.b16 %v332
        %v422 = vunpack.c.l.b16 %v333
        %v423 = vunpack.c.h.b16 %v333
        %v424 = vunpack.c.l.b16 %v334
        %v425 = vunpack.c.h.b16 %v334
        %v426 = vunpack.c.l.b16 %v335
        %v427 = vunpack.c.h.b16 %v335
        %v428 = vunpack.c.l.b16 %v336
        %v429 = vunpack.c.h.b16 %v336
        %v430 = vunpack.c.l.b16 %v337
        %v431 = vunpack.c.h.b16 %v337
        %v432 = vunpack.c.l.b16 %v338
        %v433 = vunpack.c.h.b16 %v338
        %v434 = vunpack.c.l.b16 %v339
        %v435 = vunpack.c.h.b16 %v339
        %v436 = vunpack.c.l.b16 %v340
        %v437 = vunpack.c.h.b16 %v340
        %v438 = vpack.c.b16 %v386, %v384
        %v439 = vpack.c.b16 %v387, %v385
        %v440 = vpack.c.b16 %v390, %v388
        %v441 = vpack.c.b16 %v391, %v389
        %v442 = vpack.c.b16 %v394, %v392
        %v443 = vpack.c.b16 %v395, %v393
        %v444 = vpack.c.b16 %v398, %v396
        %v445 = vpack.c.b16 %v399, %v397
        %v446 = vpack.c.b16 %v402, %v400
        %v447 = vpack.c.b16 %v403, %v401
        %v448 = vpack.c.b16 %v406, %v404
        %v449 = vpack.c.b16 %v407, %v405
        %v450 = vpack.c.b16 %v410, %v408
        %v451 = vpack.c.b16 %v411, %v409
        %v452 = vpack.c.b16 %v414, %v412
        %v453 = vpack.c.b16 %v415, %v413
        %v454 = vpack.c.b16 %v418, %v416
        %v455 = vpack.c.b16 %v419, %v417
        %v456 = vpack.c.b16 %v422, %v420
        %v457 = vpack.c.b16 %v423, %v421
        %v458 = vpack.c.b16 %v426, %v424
        %v459 = vpack.c.b16 %v427, %v425
        %v460 = vpack.c.b16 %v430, %v428
        %v461 = vpack.c.b16 %v431, %v429
        %v462 = vpack.c.b16 %v434, %v432
        %v463 = vpack.c.b16 %v435, %v433
        %v464 = vpack.c.b16 %v436, %v436
        %v465 = vpack.c.b16 %v437, %v437
        %vm492 = vcmask 719872
        %v494 = vsel %vm492, %v355, 0
        %vm496 = vcmask 1043456
        %v498 = vsel %vm496, %v464, 0
        %v501 = vsel %vm496, %v465, 0
        %503 = vmatprep.subr.bf16.mxu0 %v439
        %504 = vmatpush1.bf16.msra.mxu0 %v438
        %505 = vmatprep.subr.bf16.mxu0 %v441
        %506 = vmatpush1.bf16.msra.mxu0 %v440
        %507 = vmatprep.subr.bf16.mxu0 %v443
        %508 = vmatpush1.bf16.msra.mxu0 %v442
        %509 = vmatprep.subr.bf16.mxu0 %v445
        %510 = vmatpush1.bf16.msra.mxu0 %v444
        %511 = vmatprep.subr.bf16.mxu0 %v447
        %512 = vmatpush1.bf16.msra.mxu0 %v446
        %513 = vmatprep.subr.bf16.mxu0 %v449
        %514 = vmatpush1.bf16.msra.mxu0 %v448
        %515 = vmatprep.subr.bf16.mxu0 %v451
        %516 = vmatpush1.bf16.msra.mxu0 %v450
        %517 = vmatprep.subr.bf16.mxu0 %v453
        %518 = vmatpush1.bf16.msra.mxu0 %v452
        %519 = vmatprep.subr.bf16.mxu0 %v455
        %520 = vmatpush1.bf16.msra.mxu0 %v454
        %521 = vmatprep.subr.bf16.mxu0 %v457
        %522 = vmatpush1.bf16.msra.mxu0 %v456
        %523 = vmatprep.subr.bf16.mxu0 %v459
        %524 = vmatpush1.bf16.msra.mxu0 %v458
        %525 = vmatprep.subr.bf16.mxu0 %v461
        %526 = vmatpush1.bf16.msra.mxu0 %v460
        %527 = vmatprep.subr.bf16.mxu0 %v463
        %528 = vmatpush1.bf16.msra.mxu0 %v462
        %529 = vmatprep.subr.bf16.mxu0 %v501
        %530 = vmatpush1.bf16.msra.mxu0 %v498
        %531 = vmatprep.subr.bf16.mxu0 0
        %532 = vmatpush1.bf16.msra.mxu0 0
        %533 = vmatprep.subr.bf16.mxu0 0
        %534 = vmatpush1.bf16.msra.mxu0 0
        %535 = vmatprep.mubr.bf16.mxu0 %v494
        %536 = vmatmul.mubr.bf16.gmra.mrb[0].mxu0 %v354
        %v537 = vpop.f32.mrb[0].mxu0
        %v538 = vadd.f32 %v345, %v537
        %v539 = vpop.f32.mrb[0].mxu0
        %v540 = vadd.f32 %v345, %v539
        %v541 = vpop.f32.mrb[0].mxu0
        %v542 = vpop.f32.mrb[0].mxu0
        %543 = vdwg.mxu0
        %v546 = vcombine.low %v538, %v540
        %548 = vst [vmem:[%s310] sm:$0xff] %v546
        %s549 = smul.u32 2, %s14
        %p550 = scmp.lt.s32.totalorder %s549, 3
        %s551 = scalar_select %p550, %s549, 3
        %s552 = smul.addr %s551, 4
        %s553 = scalar_lea.vmem %s3, %s552
        // Predicated region
        $region71: #{_lambda_.11} parent=65 // pred_check
          %p554 = pneg %p100
        $region72: #{_lambda_.11} parent=65 // pred_check_branch
          %556 = sbr.rel (%p554) target = $region74
        $region73: #{_lambda_.11} parent=65 // pred_region
          %s557 = smul.u32 2, %s14
        $region74: #{_lambda_.11} parent=65 // pred_fallthru
          _
      $region66: #{_lambda_.11} parent=5 // pred_fallthru
        _
      %p558 = scmp.le.s32.totalorder 2, %s9
      // Predicated region
      $region75: #{_lambda_.11} parent=5 // pred_check
        %p559 = pneg %p558
      $region76: #{_lambda_.11} parent=5 // pred_check_branch
        %561 = sbr.rel (%p559) target = $region78
      $region77: #{_lambda_.11} parent=5 // pred_region
        %s562 = ssub.s32 %s9, 2
        // Predicated region
        $region79: #{_lambda_.11} parent=77 // pred_check
          %p563 = pneg %p106
        $region80: #{_lambda_.11} parent=77 // pred_check_branch
          %565 = sbr.rel (%p563) target = $region82
        $region81: #{_lambda_.11} parent=77 // pred_region
          %s566 = smul.u32 2, %s15
          %p567 = scmp.lt.s32.totalorder %s566, 3
          %s568 = scalar_select %p567, %s566, 3
          %s569 = smul.addr %s568, 4
          %s570 = scalar_lea.vmem %s3, %s569
        $region82: #{_lambda_.11} parent=77 // pred_fallthru
          _
      $region78: #{_lambda_.11} parent=5 // pred_fallthru
        _
    $region6: #{_lambda_.11} parent=1 // loop_footer
      %s13 = sadd.s32 1, %s9
    $region7: #{_lambda_.11} parent=1 // loop_footer_branch
      %8 = sbr.rel target = $region3
    $region8: #{_lambda_.11} parent=1 // loop_exit
      _

// kernel: _lambda_.12
$region0: #{_lambda_.12}
  #allocation0 [shape = 'u32[]', space=smem, size = 0x4, offset = 0x4, fixed_abs, tag = 'smem constant byte address 0x4 - core index']
  #allocation1 [shape = 'u32[144,128]{1,0:T(1,128)}', space=vmem, size = 0x12000, scoped, tag = 'internal scratch']
  #allocation2 [shape = 'f32[1,1]{1,0:T(1,128)S(1)}', space=vmem, size = 0x200, scoped, tag = 'scoped memory for _lambda_.12']
  %s0 = inlined_call_operand.vmem [shape: bf16[1,108], index: 0, kind: input, shape index: {}]
  %s1 = inlined_call_operand.vmem [shape: bf16[108,3584], index: 1, kind: input, shape index: {}]
  %s2 = inlined_call_operand.<no memory space> [shape: f32[1,1], index: 2, kind: input, shape index: {}]
  %s3 = inlined_call_operand.vmem [shape: f32[1,3584], index: 3, kind: output, shape index: {}]
  %s4 = sld [smem:[#allocation0]]
  $region83: #{_lambda_.12} parent=0
    _
  %s6 = ssub.s32 1, %s4
  %s7 = scalar_select 0, %s6, %s4
  %v8 = vstv %s2
  %9 = vst [vmem:[#allocation2] sm:$0x1] %v8
  $region1: #{_lambda_.12} parent=0
    #allocation3 [shape = 'u8[114688]{0}', space=vmem, size = 0x1c000, scoped, tag = 'input window, operand 1']
    loop: start=0, step=1, limit=16
    $region2: #{_lambda_.12} parent=1 // loop_pre_header
      _
    $region3: #{_lambda_.12} parent=1 // loop_header
      %s11 = sphi 0, %s15
      %p12 = scmp.ge.s32.totalorder %s11, 16
      %s19 = sphi 0, %s19
      %s21 = sphi 0, %s19
      %s22 = sphi 0, %s21
      %s36 = sphi 0, %s22
      %s42 = sphi 0, %s44
      %s45 = sphi 0, %s42
      %s46 = sphi 0, %s45
      %s62 = sphi 0, %s46
      %s66 = sphi 0, %s66
      %s68 = sphi 0, %s66
      %s69 = sphi 0, %s68
      %s83 = sphi 0, %s69
      %s89 = sphi 0, %s91
      %s92 = sphi 0, %s89
      %s93 = sphi 0, %s92
      %s109 = sphi 0, %s93
    $region4: #{_lambda_.12} parent=1 // loop_header_branch
      %14 = sbr.rel (%p12) target = $region8
    $region5: #{_lambda_.12} parent=1 // loop_body
      %s16 = ssub.s32 %s11, 1
      %s17 = ssub.s32 %s11, 2
      %s18 = sadd.s32 %s11, 1
      %s20 = sadd.s32 %s19, 1
      %p23 = scmp.eq.s32.totalorder %s11, 13
      %p24 = scmp.ne.s32.totalorder %s19, %s21
      %p25 = scmp.eq.s32.totalorder %s11, 0
      %p26 = por %p24, %p25
      %p27 = scmp.ne.s32.totalorder %s19, %s21
      %p28 = scmp.eq.s32.totalorder %s16, 13
      %p29 = por %p27, %p28
      %p30 = scmp.ne.s32.totalorder %s21, %s22
      %p31 = scmp.eq.s32.totalorder %s16, 0
      %p32 = por %p30, %p31
      %p33 = scmp.ne.s32.totalorder %s21, %s22
      %p34 = scmp.eq.s32.totalorder %s17, 13
      %p35 = por %p33, %p34
      %p37 = scmp.ne.s32.totalorder %s22, %s36
      %p38 = scmp.eq.s32.totalorder %s17, 0
      %p39 = por %p37, %p38
      %s40 = ssub.s32 %s11, %s18
      %p41 = scmp.eq.s32.totalorder %s40, 0
      %s43 = sadd.s32 %s42, 1
      %s44 = scalar_select %p41, %s42, %s43
      %p47 = pneg %p41
      %p48 = scmp.eq.s32.totalorder %s11, 13
      %p49 = por %p47, %p48
      %p50 = scmp.ne.s32.totalorder %s42, %s45
      %p51 = scmp.eq.s32.totalorder %s11, 0
      %p52 = por %p50, %p51
      %p53 = scmp.ne.s32.totalorder %s42, %s45
      %p54 = scmp.eq.s32.totalorder %s16, 13
      %p55 = por %p53, %p54
      %p56 = scmp.ne.s32.totalorder %s45, %s46
      %p57 = scmp.eq.s32.totalorder %s16, 0
      %p58 = por %p56, %p57
      %p59 = scmp.ne.s32.totalorder %s45, %s46
      %p60 = scmp.eq.s32.totalorder %s17, 13
      %p61 = por %p59, %p60
      %p63 = scmp.ne.s32.totalorder %s46, %s62
      %p64 = scmp.eq.s32.totalorder %s17, 0
      %p65 = por %p63, %p64
      %s67 = sadd.s32 %s66, 1
      %p70 = scmp.eq.s32.totalorder %s11, 13
      %p71 = scmp.ne.s32.totalorder %s66, %s68
      %p72 = scmp.eq.s32.totalorder %s11, 0
      %p73 = por %p71, %p72
      %p74 = scmp.ne.s32.totalorder %s66, %s68
      %p75 = scmp.eq.s32.totalorder %s16, 13
      %p76 = por %p74, %p75
      %p77 = scmp.ne.s32.totalorder %s68, %s69
      %p78 = scmp.eq.s32.totalorder %s16, 0
      %p79 = por %p77, %p78
      %p80 = scmp.ne.s32.totalorder %s68, %s69
      %p81 = scmp.eq.s32.totalorder %s17, 13
      %p82 = por %p80, %p81
      %p84 = scmp.ne.s32.totalorder %s69, %s83
      %p85 = scmp.eq.s32.totalorder %s17, 0
      %p86 = por %p84, %p85
      %s87 = ssub.s32 %s11, %s18
      %p88 = scmp.eq.s32.totalorder %s87, 0
      %s90 = sadd.s32 %s89, 1
      %s91 = scalar_select %p88, %s89, %s90
      %p94 = pneg %p88
      %p95 = scmp.eq.s32.totalorder %s11, 13
      %p96 = por %p94, %p95
      %p97 = scmp.ne.s32.totalorder %s89, %s92
      %p98 = scmp.eq.s32.totalorder %s11, 0
      %p99 = por %p97, %p98
      %p100 = scmp.ne.s32.totalorder %s89, %s92
      %p101 = scmp.eq.s32.totalorder %s16, 13
      %p102 = por %p100, %p101
      %p103 = scmp.ne.s32.totalorder %s92, %s93
      %p104 = scmp.eq.s32.totalorder %s16, 0
      %p105 = por %p103, %p104
      %p106 = scmp.ne.s32.totalorder %s92, %s93
      %p107 = scmp.eq.s32.totalorder %s17, 13
      %p108 = por %p106, %p107
      %p110 = scmp.ne.s32.totalorder %s93, %s109
      %p111 = scmp.eq.s32.totalorder %s17, 0
      %p112 = por %p110, %p111
      %p113 = scmp.le.s32.totalorder 1, %s11
      %p114 = scmp.lt.s32.totalorder %s11, 15
      %p115 = pnand %p113, %p114
      %p116 = pneg %p115
      // Predicated region
      $region9: #{_lambda_.12} parent=5 // pred_check
        _
      $region10: #{_lambda_.12} parent=5 // pred_check_branch
        %118 = sbr.rel (%p115) target = $region12
      $region11: #{_lambda_.12} parent=5 // pred_region
        %s119 = ssub.s32 %s11, 1
        // Predicated region
        $region13: #{_lambda_.12} parent=11 // pred_check
          %p120 = pneg %p32
        $region14: #{_lambda_.12} parent=11 // pred_check_branch
          %122 = sbr.rel (%p120) target = $region16
        $region15: #{_lambda_.12} parent=11 // pred_region
          _
        $region16: #{_lambda_.12} parent=11 // pred_fallthru
          _
        // Predicated region
        $region17: #{_lambda_.12} parent=11 // pred_check
          %p123 = pneg %p79
        $region18: #{_lambda_.12} parent=11 // pred_check_branch
          %125 = sbr.rel (%p123) target = $region20
        $region19: #{_lambda_.12} parent=11 // pred_region
          _
        $region20: #{_lambda_.12} parent=11 // pred_fallthru
          _
      $region12: #{_lambda_.12} parent=5 // pred_fallthru
        _
      %p126 = scmp.lt.s32.totalorder %s11, 14
      // Predicated region
      $region21: #{_lambda_.12} parent=5 // pred_check
        %p127 = pneg %p126
      $region22: #{_lambda_.12} parent=5 // pred_check_branch
        %129 = sbr.rel (%p127) target = $region24
      $region23: #{_lambda_.12} parent=5 // pred_region
        // Predicated region
        $region25: #{_lambda_.12} parent=23 // pred_check
          %p130 = pneg %p52
        $region26: #{_lambda_.12} parent=23 // pred_check_branch
          %132 = sbr.rel (%p130) target = $region28
        $region27: #{_lambda_.12} parent=23 // pred_region
          %s133 = sand.u32 %s42, 1
          %s134 = sand.u32 %s42, 1
          %s135 = smul.addr %s134, 112
          %s136 = scalar_lea.vmem [#allocation3], %s135
          %s137 = smul.u32 2, %s11
          %s138 = smul.addr %s137, 4
          %s139 = scalar_lea.vmem %s1, %s138
          // Predicated region
          $region29: #{_lambda_.12} parent=27 // pred_check
            _
          $region30: #{_lambda_.12} parent=27 // pred_check_branch
            %141 = sbr.rel (0) target = $region32
          $region31: #{_lambda_.12} parent=27 // pred_region
            // Predicated region
            $region33: #{_lambda_.12} parent=31 // pred_check
              _
            $region34: #{_lambda_.12} parent=31 // pred_check_branch
              %143 = sbr.rel (0) target = $region36
            $region35: #{_lambda_.12} parent=31 // pred_region
              // Predicated region
              $region48: #{_lambda_.12} parent=35 // pred_check
                _
              $region49: #{_lambda_.12} parent=35 // pred_check_branch
                %184 = sbr.rel (0) target = $region51
              $region50: #{_lambda_.12} parent=35 // pred_region
                loop: start=0, step=1, limit=1
                $region52: #{_lambda_.12} parent=50 // loop_pre_header
                  _
                $region53: #{_lambda_.12} parent=50 // loop_header
                  %s186 = sphi 0, %s190
                  %p187 = scmp.ge.s32.totalorder %s186, 1
                  %s191 = sphi %s139, %s139
                  %s192 = sphi %s136, %s136
                $region54: #{_lambda_.12} parent=50 // loop_header_branch
                  %189 = sbr.rel (%p187) target = $region58
                $region55: #{_lambda_.12} parent=50 // loop_body
                  %v193 = vld [vmem:[%s191] sm:$0xff]
                  %194 = vst [vmem:[%s192] sm:$0xff] %v193
                  %v195 = vld [vmem:[%s191 + $0x70] sm:$0xff]
                  %196 = vst [vmem:[%s192 + $0x8] sm:$0xff] %v195
                  %v197 = vld [vmem:[%s191 + $0xe0] sm:$0xff]
                  %198 = vst [vmem:[%s192 + $0x10] sm:$0xff] %v197
                  %v199 = vld [vmem:[%s191 + $0x150] sm:$0xff]
                  %200 = vst [vmem:[%s192 + $0x18] sm:$0xff] %v199
                  %v201 = vld [vmem:[%s191 + $0x1c0] sm:$0xff]
                  %202 = vst [vmem:[%s192 + $0x20] sm:$0xff] %v201
                  %v203 = vld [vmem:[%s191 + $0x230] sm:$0xff]
                  %204 = vst [vmem:[%s192 + $0x28] sm:$0xff] %v203
                  %v205 = vld [vmem:[%s191 + $0x2a0] sm:$0xff]
                  %206 = vst [vmem:[%s192 + $0x30] sm:$0xff] %v205
                  %v207 = vld [vmem:[%s191 + $0x310] sm:$0xff]
                  %208 = vst [vmem:[%s192 + $0x38] sm:$0xff] %v207
                  %v209 = vld [vmem:[%s191 + $0x380] sm:$0xff]
                  %210 = vst [vmem:[%s192 + $0x40] sm:$0xff] %v209
                  %v211 = vld [vmem:[%s191 + $0x3f0] sm:$0xff]
                  %212 = vst [vmem:[%s192 + $0x48] sm:$0xff] %v211
                  %v213 = vld [vmem:[%s191 + $0x460] sm:$0xff]
                  %214 = vst [vmem:[%s192 + $0x50] sm:$0xff] %v213
                  %v215 = vld [vmem:[%s191 + $0x4d0] sm:$0xff]
                  %216 = vst [vmem:[%s192 + $0x58] sm:$0xff] %v215
                  %v217 = vld [vmem:[%s191 + $0x540] sm:$0xff]
                  %218 = vst [vmem:[%s192 + $0x60] sm:$0xff] %v217
                  %v219 = vld [vmem:[%s191 + $0x5b0] sm:$0xff]
                  %220 = vst [vmem:[%s192 + $0x68] sm:$0xff] %v219
                $region56: #{_lambda_.12} parent=50 // loop_footer
                  %s190 = sadd.s32 1, %s186
                $region57: #{_lambda_.12} parent=50 // loop_footer_branch
                  %185 = sbr.rel target = $region53
                $region58: #{_lambda_.12} parent=50 // loop_exit
                  _
              $region51: #{_lambda_.12} parent=35 // pred_fallthru
                _
              // Predicated region
              $region59: #{_lambda_.12} parent=35 // pred_check
                _
              $region60: #{_lambda_.12} parent=35 // pred_check_branch
                %222 = sbr.rel target = $region62
              $region61: #{_lambda_.12} parent=35 // pred_region
                _
              $region62: #{_lambda_.12} parent=35 // pred_fallthru
                _
            $region36: #{_lambda_.12} parent=31 // pred_fallthru
              _
            // Predicated region
            $region37: #{_lambda_.12} parent=31 // pred_check
              _
            $region38: #{_lambda_.12} parent=31 // pred_check_branch
              %145 = sbr.rel target = $region40
            $region39: #{_lambda_.12} parent=31 // pred_region
              loop: start=0, step=1, limit=1
              $region41: #{_lambda_.12} parent=39 // loop_pre_header
                _
              $region42: #{_lambda_.12} parent=39 // loop_header
                %s148 = sphi 0, %s152
                %p149 = scmp.ge.s32.totalorder %s148, 1
                %s153 = sphi %s139, %s139
                %s154 = sphi %s136, %s136
              $region43: #{_lambda_.12} parent=39 // loop_header_branch
                %151 = sbr.rel (%p149) target = $region47
              $region44: #{_lambda_.12} parent=39 // loop_body
                %v155 = vld [vmem:[%s153] sm:$0xff]
                %156 = vst [vmem:[%s154] sm:$0xff] %v155
                %v157 = vld [vmem:[%s153 + $0x70] sm:$0xff]
                %158 = vst [vmem:[%s154 + $0x8] sm:$0xff] %v157
                %v159 = vld [vmem:[%s153 + $0xe0] sm:$0xff]
                %160 = vst [vmem:[%s154 + $0x10] sm:$0xff] %v159
                %v161 = vld [vmem:[%s153 + $0x150] sm:$0xff]
                %162 = vst [vmem:[%s154 + $0x18] sm:$0xff] %v161
                %v163 = vld [vmem:[%s153 + $0x1c0] sm:$0xff]
                %164 = vst [vmem:[%s154 + $0x20] sm:$0xff] %v163
                %v165 = vld [vmem:[%s153 + $0x230] sm:$0xff]
                %166 = vst [vmem:[%s154 + $0x28] sm:$0xff] %v165
                %v167 = vld [vmem:[%s153 + $0x2a0] sm:$0xff]
                %168 = vst [vmem:[%s154 + $0x30] sm:$0xff] %v167
                %v169 = vld [vmem:[%s153 + $0x310] sm:$0xff]
                %170 = vst [vmem:[%s154 + $0x38] sm:$0xff] %v169
                %v171 = vld [vmem:[%s153 + $0x380] sm:$0xff]
                %172 = vst [vmem:[%s154 + $0x40] sm:$0xff] %v171
                %v173 = vld [vmem:[%s153 + $0x3f0] sm:$0xff]
                %174 = vst [vmem:[%s154 + $0x48] sm:$0xff] %v173
                %v175 = vld [vmem:[%s153 + $0x460] sm:$0xff]
                %176 = vst [vmem:[%s154 + $0x50] sm:$0xff] %v175
                %v177 = vld [vmem:[%s153 + $0x4d0] sm:$0xff]
                %178 = vst [vmem:[%s154 + $0x58] sm:$0xff] %v177
                %v179 = vld [vmem:[%s153 + $0x540] sm:$0xff]
                %180 = vst [vmem:[%s154 + $0x60] sm:$0xff] %v179
                %v181 = vld [vmem:[%s153 + $0x5b0] sm:$0xff]
                %182 = vst [vmem:[%s154 + $0x68] sm:$0xff] %v181
              $region45: #{_lambda_.12} parent=39 // loop_footer
                %s152 = sadd.s32 1, %s148
              $region46: #{_lambda_.12} parent=39 // loop_footer_branch
                %147 = sbr.rel target = $region42
              $region47: #{_lambda_.12} parent=39 // loop_exit
                _
            $region40: #{_lambda_.12} parent=31 // pred_fallthru
              _
          $region32: #{_lambda_.12} parent=27 // pred_fallthru
            _
          %223 = vnop
        $region28: #{_lambda_.12} parent=23 // pred_fallthru
          _
      $region24: #{_lambda_.12} parent=5 // pred_fallthru
        _
      %p224 = scmp.le.s32.totalorder 1, %s11
      %p225 = scmp.lt.s32.totalorder %s11, 15
      %p226 = pnand %p224, %p225
      %p227 = pneg %p226
      // Predicated region
      $region63: #{_lambda_.12} parent=5 // pred_check
        _
      $region64: #{_lambda_.12} parent=5 // pred_check_branch
        %229 = sbr.rel (%p226) target = $region66
      $region65: #{_lambda_.12} parent=5 // pred_region
        %s230 = ssub.s32 %s11, 1
        %s231 = sand.u32 %s45, 1
        %s232 = sand.u32 %s45, 1
        %s233 = smul.addr %s232, 112
        %s234 = scalar_lea.vmem [#allocation3], %s233
        // Predicated region
        $region67: #{_lambda_.12} parent=65 // pred_check
          %p235 = pneg %p58
        $region68: #{_lambda_.12} parent=65 // pred_check_branch
          %237 = sbr.rel (%p235) target = $region70
        $region69: #{_lambda_.12} parent=65 // pred_region
          _
        $region70: #{_lambda_.12} parent=65 // pred_fallthru
          _
        %p238 = pneg %p32
        %p239 = pneg %p29
        %s240 = sand.u32 %s45, 1
        %s241 = sand.u32 %s45, 1
        %s242 = smul.addr %s241, 112
        %s243 = scalar_lea.vmem [#allocation3], %s242
        %p244 = pneg %p58
        %p245 = pneg %p55
        %p246 = pneg %p79
        %p247 = pneg %p76
        %p248 = pneg %p105
        %p249 = pneg %p102
        %s250 = smul.u32 2, %s16
        %p251 = scmp.lt.s32.totalorder %s250, 27
        %s252 = scalar_select %p251, %s250, 27
        %s253 = scalar_lea.vmem %s3, %s252
        %s254 = smul.u32 2, %s16
        %s255 = smul.u32 2, %s16
        %p256 = scmp.lt.s32.totalorder %s255, 27
        %s257 = scalar_select %p256, %s255, 27
        %s258 = scalar_lea.vmem %s3, %s257
        %s259 = smul.u32 2, %s16
        %v261 = vld [vmem:[%s0] sm:$0x1]
        %v262 = vld [vmem:[%s234] sm:$0xff]
        %v263 = vld [vmem:[%s234 + $0x8] sm:$0xff]
        %v264 = vld [vmem:[%s234 + $0x10] sm:$0xff]
        %v265 = vld [vmem:[%s234 + $0x18] sm:$0xff]
        %v266 = vld [vmem:[%s234 + $0x20] sm:$0xff]
        %v267 = vld [vmem:[%s234 + $0x28] sm:$0xff]
        %v268 = vld [vmem:[%s234 + $0x30] sm:$0xff]
        %v269 = vld [vmem:[%s234 + $0x38] sm:$0xff]
        %v270 = vld [vmem:[%s234 + $0x40] sm:$0xff]
        %v271 = vld [vmem:[%s234 + $0x48] sm:$0xff]
        %v272 = vld [vmem:[%s234 + $0x50] sm:$0xff]
        %v273 = vld [vmem:[%s234 + $0x58] sm:$0xff]
        %v274 = vld [vmem:[%s234 + $0x60] sm:$0xff]
        %v275 = vld [vmem:[%s234 + $0x68] sm:$0x33]
        %v276 = vld [vmem:[#allocation2] sm:$0x1]
        %278 = vset.pattern.permute.xlu0 0
        %279 = vperm.xlu0 %278, %v276
        %v280 = vpop.permute.xlu0 %279
        %v282 = vlaneseq
        %v283 = vshrl.u32 %v282, 7
        %v284 = vsub.s32 0, %v283
        %v285 = vrot.slane %v280, %v284
        %v300 = vunpack.c.l.b16 %v262
        %v301 = vunpack.c.h.b16 %v262
        %v302 = vunpack.c.l.b16 %v263
        %v303 = vunpack.c.h.b16 %v263
        %v304 = vunpack.c.l.b16 %v264
        %v305 = vunpack.c.h.b16 %v264
        %v306 = vunpack.c.l.b16 %v265
        %v307 = vunpack.c.h.b16 %v265
        %v308 = vunpack.c.l.b16 %v266
        %v309 = vunpack.c.h.b16 %v266
        %v310 = vunpack.c.l.b16 %v267
        %v311 = vunpack.c.h.b16 %v267
        %v312 = vunpack.c.l.b16 %v268
        %v313 = vunpack.c.h.b16 %v268
        %v314 = vunpack.c.l.b16 %v269
        %v315 = vunpack.c.h.b16 %v269
        %v316 = vunpack.c.l.b16 %v270
        %v317 = vunpack.c.h.b16 %v270
        %v318 = vunpack.c.l.b16 %v271
        %v319 = vunpack.c.h.b16 %v271
        %v320 = vunpack.c.l.b16 %v272
        %v321 = vunpack.c.h.b16 %v272
        %v322 = vunpack.c.l.b16 %v273
        %v323 = vunpack.c.h.b16 %v273
        %v324 = vunpack.c.l.b16 %v274
        %v325 = vunpack.c.h.b16 %v274
        %v326 = vunpack.c.l.b16 %v275
        %v327 = vunpack.c.h.b16 %v275
        %v328 = vpack.c.b16 %v302, %v300
        %v329 = vpack.c.b16 %v303, %v301
        %v330 = vpack.c.b16 %v306, %v304
        %v331 = vpack.c.b16 %v307, %v305
        %v332 = vpack.c.b16 %v310, %v308
        %v333 = vpack.c.b16 %v311, %v309
        %v334 = vpack.c.b16 %v314, %v312
        %v335 = vpack.c.b16 %v315, %v313
        %v336 = vpack.c.b16 %v318, %v316
        %v337 = vpack.c.b16 %v319, %v317
        %v338 = vpack.c.b16 %v322, %v320
        %v339 = vpack.c.b16 %v323, %v321
        %v340 = vpack.c.b16 %v326, %v324
        %v341 = vpack.c.b16 %v327, %v325
        %vm354 = vcmask 883712
        %v356 = vsel %vm354, %v261, 0
        %vm358 = vcmask 1045504
        %v360 = vsel %vm358, %v340, 0
        %v363 = vsel %vm358, %v341, 0
        %365 = vmatprep.subr.bf16.mxu0 %v329
        %366 = vmatpush1.bf16.msra.mxu0 %v328
        %367 = vmatprep.subr.bf16.mxu0 %v331
        %368 = vmatpush1.bf16.msra.mxu0 %v330
        %369 = vmatprep.subr.bf16.mxu0 %v333
        %370 = vmatpush1.bf16.msra.mxu0 %v332
        %371 = vmatprep.subr.bf16.mxu0 %v335
        %372 = vmatpush1.bf16.msra.mxu0 %v334
        %373 = vmatprep.subr.bf16.mxu0 %v337
        %374 = vmatpush1.bf16.msra.mxu0 %v336
        %375 = vmatprep.subr.bf16.mxu0 %v339
        %376 = vmatpush1.bf16.msra.mxu0 %v338
        %377 = vmatprep.subr.bf16.mxu0 %v363
        %378 = vmatpush1.bf16.msra.mxu0 %v360
        %379 = vmatprep.subr.bf16.mxu0 0
        %380 = vmatpush1.bf16.msra.mxu0 0
        %381 = vmatprep.subr.bf16.mxu0 0
        %382 = vmatpush1.bf16.msra.mxu0 0
        %383 = vmatprep.subr.bf16.mxu0 0
        %384 = vmatpush1.bf16.msra.mxu0 0
        %385 = vmatprep.subr.bf16.mxu0 0
        %386 = vmatpush1.bf16.msra.mxu0 0
        %387 = vmatprep.subr.bf16.mxu0 0
        %388 = vmatpush1.bf16.msra.mxu0 0
        %389 = vmatprep.subr.bf16.mxu0 0
        %390 = vmatpush1.bf16.msra.mxu0 0
        %391 = vmatprep.subr.bf16.mxu0 0
        %392 = vmatpush1.bf16.msra.mxu0 0
        %393 = vmatprep.subr.bf16.mxu0 0
        %394 = vmatpush1.bf16.msra.mxu0 0
        %395 = vmatprep.subr.bf16.mxu0 0
        %396 = vmatpush1.bf16.msra.mxu0 0
        %397 = vmatprep.mubr.bf16.mxu0 0
        %398 = vmatmul.mubr.bf16.gmra.mrb[0].mxu0 %v356
        %v399 = vpop.f32.mrb[0].mxu0
        %v400 = vadd.f32 %v285, %v399
        %v401 = vpop.f32.mrb[0].mxu0
        %v402 = vadd.f32 %v285, %v401
        %v403 = vpop.f32.mrb[0].mxu0
        %v404 = vpop.f32.mrb[0].mxu0
        %405 = vdwg.mxu0
        %v408 = vcombine.low %v400, %v402
        %v410 = vunpack.c.l.s4 1966171168
        %v411 = vunpack.c.0.s8 %v410
        %v412 = vlaneseq
        %v413 = vshrl.u32 %v412, 7
        %v414 = vsub.s32 %v411, %v413
        %v415 = vrot.slane %v408, %v414
        %v417 = vunpack.c.l.s4 1966171168
        %v418 = vunpack.c.0.s8 %v417
        %v419 = vlaneseq
        %v420 = vshrl.u32 %v419, 7
        %v421 = vsub.s32 %v418, %v420
        %v422 = vrot.slane %v415, %v421
        %v424 = vlaneseq
        %vm425 = vcmp.ge.s32.totalorder %v424, 0
        %vm426 = vcmp.lt.s32.totalorder %v424, 256
        %vm427 = vmand %vm425, %vm426
        %428 = vst.msk [vmem:[%s258] sm:$0x3] %vm427, %v422
        %s429 = smul.u32 2, %s16
        %p430 = scmp.lt.s32.totalorder %s429, 27
        %s431 = scalar_select %p430, %s429, 27
        %s432 = scalar_lea.vmem %s3, %s431
        // Predicated region
        $region71: #{_lambda_.12} parent=65 // pred_check
          %p433 = pneg %p102
        $region72: #{_lambda_.12} parent=65 // pred_check_branch
          %435 = sbr.rel (%p433) target = $region74
        $region73: #{_lambda_.12} parent=65 // pred_region
          %s436 = smul.u32 2, %s16
        $region74: #{_lambda_.12} parent=65 // pred_fallthru
          _
      $region66: #{_lambda_.12} parent=5 // pred_fallthru
        _
      %p437 = scmp.le.s32.totalorder 2, %s11
      // Predicated region
      $region75: #{_lambda_.12} parent=5 // pred_check
        %p438 = pneg %p437
      $region76: #{_lambda_.12} parent=5 // pred_check_branch
        %440 = sbr.rel (%p438) target = $region78
      $region77: #{_lambda_.12} parent=5 // pred_region
        %s441 = ssub.s32 %s11, 2
        // Predicated region
        $region79: #{_lambda_.12} parent=77 // pred_check
          %p442 = pneg %p108
        $region80: #{_lambda_.12} parent=77 // pred_check_branch
          %444 = sbr.rel (%p442) target = $region82
        $region81: #{_lambda_.12} parent=77 // pred_region
          %s445 = smul.u32 2, %s17
          %p446 = scmp.lt.s32.totalorder %s445, 27
          %s447 = scalar_select %p446, %s445, 27
          %s448 = scalar_lea.vmem %s3, %s447
        $region82: #{_lambda_.12} parent=77 // pred_fallthru
          _
      $region78: #{_lambda_.12} parent=5 // pred_fallthru
        _
    $region6: #{_lambda_.12} parent=1 // loop_footer
      %s15 = sadd.s32 1, %s11
    $region7: #{_lambda_.12} parent=1 // loop_footer_branch
      %10 = sbr.rel target = $region3
    $region8: #{_lambda_.12} parent=1 // loop_exit
      _

// kernel: _lambda_.13
$region0: #{_lambda_.13}
  #allocation0 [shape = 'u32[]', space=smem, size = 0x4, offset = 0x4, fixed_abs, tag = 'smem constant byte address 0x4 - core index']
  #allocation1 [shape = 'u32[144,128]{1,0:T(1,128)}', space=vmem, size = 0x12000, scoped, tag = 'internal scratch']
  #allocation2 [shape = 'f32[1,1]{1,0:T(1,128)S(1)}', space=vmem, size = 0x200, scoped, tag = 'scoped memory for _lambda_.13']
  %s0 = inlined_call_operand.vmem [shape: bf16[1,7], index: 0, kind: input, shape index: {}]
  %s1 = inlined_call_operand.vmem [shape: bf16[7,512], index: 1, kind: input, shape index: {}]
  %s2 = inlined_call_operand.<no memory space> [shape: f32[1,1], index: 2, kind: input, shape index: {}]
  %s3 = inlined_call_operand.vmem [shape: f32[1,512], index: 3, kind: output, shape index: {}]
  %s4 = sld [smem:[#allocation0]]
  $region45: #{_lambda_.13} parent=0
    _
  %s6 = ssub.s32 1, %s4
  %s7 = scalar_select 0, %s6, %s4
  %v8 = vstv %s2
  %9 = vst [vmem:[#allocation2] sm:$0x1] %v8
  loop: start=0, step=1, limit=4
  $region2: #{_lambda_.13} parent=0 // loop_pre_header
    _
  $region3: #{_lambda_.13} parent=0 // loop_header
    %s11 = sphi 0, %s15
    %p12 = scmp.ge.s32.totalorder %s11, 4
    %s19 = sphi 0, %s19
    %s21 = sphi 0, %s19
    %s22 = sphi 0, %s21
    %s36 = sphi 0, %s22
    %s42 = sphi 0, %s44
    %s45 = sphi 0, %s42
    %s46 = sphi 0, %s45
    %s62 = sphi 0, %s46
    %s66 = sphi 0, %s66
    %s68 = sphi 0, %s66
    %s69 = sphi 0, %s68
    %s83 = sphi 0, %s69
    %s89 = sphi 0, %s91
    %s92 = sphi 0, %s89
    %s93 = sphi 0, %s92
    %s109 = sphi 0, %s93
  $region4: #{_lambda_.13} parent=0 // loop_header_branch
    %14 = sbr.rel (%p12) target = $region8
  $region5: #{_lambda_.13} parent=0 // loop_body
    %s16 = ssub.s32 %s11, 1
    %s17 = ssub.s32 %s11, 2
    %s18 = sadd.s32 %s11, 1
    %s20 = sadd.s32 %s19, 1
    %p23 = scmp.eq.s32.totalorder %s11, 1
    %p24 = scmp.ne.s32.totalorder %s19, %s21
    %p25 = scmp.eq.s32.totalorder %s11, 0
    %p26 = por %p24, %p25
    %p27 = scmp.ne.s32.totalorder %s19, %s21
    %p28 = scmp.eq.s32.totalorder %s16, 1
    %p29 = por %p27, %p28
    %p30 = scmp.ne.s32.totalorder %s21, %s22
    %p31 = scmp.eq.s32.totalorder %s16, 0
    %p32 = por %p30, %p31
    %p33 = scmp.ne.s32.totalorder %s21, %s22
    %p34 = scmp.eq.s32.totalorder %s17, 1
    %p35 = por %p33, %p34
    %p37 = scmp.ne.s32.totalorder %s22, %s36
    %p38 = scmp.eq.s32.totalorder %s17, 0
    %p39 = por %p37, %p38
    %s40 = ssub.s32 %s11, %s18
    %p41 = scmp.eq.s32.totalorder %s40, 0
    %s43 = sadd.s32 %s42, 1
    %s44 = scalar_select %p41, %s42, %s43
    %p47 = pneg %p41
    %p48 = scmp.eq.s32.totalorder %s11, 1
    %p49 = por %p47, %p48
    %p50 = scmp.ne.s32.totalorder %s42, %s45
    %p51 = scmp.eq.s32.totalorder %s11, 0
    %p52 = por %p50, %p51
    %p53 = scmp.ne.s32.totalorder %s42, %s45
    %p54 = scmp.eq.s32.totalorder %s16, 1
    %p55 = por %p53, %p54
    %p56 = scmp.ne.s32.totalorder %s45, %s46
    %p57 = scmp.eq.s32.totalorder %s16, 0
    %p58 = por %p56, %p57
    %p59 = scmp.ne.s32.totalorder %s45, %s46
    %p60 = scmp.eq.s32.totalorder %s17, 1
    %p61 = por %p59, %p60
    %p63 = scmp.ne.s32.totalorder %s46, %s62
    %p64 = scmp.eq.s32.totalorder %s17, 0
    %p65 = por %p63, %p64
    %s67 = sadd.s32 %s66, 1
    %p70 = scmp.eq.s32.totalorder %s11, 1
    %p71 = scmp.ne.s32.totalorder %s66, %s68
    %p72 = scmp.eq.s32.totalorder %s11, 0
    %p73 = por %p71, %p72
    %p74 = scmp.ne.s32.totalorder %s66, %s68
    %p75 = scmp.eq.s32.totalorder %s16, 1
    %p76 = por %p74, %p75
    %p77 = scmp.ne.s32.totalorder %s68, %s69
    %p78 = scmp.eq.s32.totalorder %s16, 0
    %p79 = por %p77, %p78
    %p80 = scmp.ne.s32.totalorder %s68, %s69
    %p81 = scmp.eq.s32.totalorder %s17, 1
    %p82 = por %p80, %p81
    %p84 = scmp.ne.s32.totalorder %s69, %s83
    %p85 = scmp.eq.s32.totalorder %s17, 0
    %p86 = por %p84, %p85
    %s87 = ssub.s32 %s11, %s18
    %p88 = scmp.eq.s32.totalorder %s87, 0
    %s90 = sadd.s32 %s89, 1
    %s91 = scalar_select %p88, %s89, %s90
    %p94 = pneg %p88
    %p95 = scmp.eq.s32.totalorder %s11, 1
    %p96 = por %p94, %p95
    %p97 = scmp.ne.s32.totalorder %s89, %s92
    %p98 = scmp.eq.s32.totalorder %s11, 0
    %p99 = por %p97, %p98
    %p100 = scmp.ne.s32.totalorder %s89, %s92
    %p101 = scmp.eq.s32.totalorder %s16, 1
    %p102 = por %p100, %p101
    %p103 = scmp.ne.s32.totalorder %s92, %s93
    %p104 = scmp.eq.s32.totalorder %s16, 0
    %p105 = por %p103, %p104
    %p106 = scmp.ne.s32.totalorder %s92, %s93
    %p107 = scmp.eq.s32.totalorder %s17, 1
    %p108 = por %p106, %p107
    %p110 = scmp.ne.s32.totalorder %s93, %s109
    %p111 = scmp.eq.s32.totalorder %s17, 0
    %p112 = por %p110, %p111
    %p113 = scmp.le.s32.totalorder 1, %s11
    %p114 = scmp.lt.s32.totalorder %s11, 3
    %p115 = pnand %p113, %p114
    %p116 = pneg %p115
    // Predicated region
    $region9: #{_lambda_.13} parent=5 // pred_check
      _
    $region10: #{_lambda_.13} parent=5 // pred_check_branch
      %118 = sbr.rel (%p115) target = $region12
    $region11: #{_lambda_.13} parent=5 // pred_region
      %s119 = ssub.s32 %s11, 1
      // Predicated region
      $region13: #{_lambda_.13} parent=11 // pred_check
        %p120 = pneg %p32
      $region14: #{_lambda_.13} parent=11 // pred_check_branch
        %122 = sbr.rel (%p120) target = $region16
      $region15: #{_lambda_.13} parent=11 // pred_region
        _
      $region16: #{_lambda_.13} parent=11 // pred_fallthru
        _
      // Predicated region
      $region17: #{_lambda_.13} parent=11 // pred_check
        %p123 = pneg %p79
      $region18: #{_lambda_.13} parent=11 // pred_check_branch
        %125 = sbr.rel (%p123) target = $region20
      $region19: #{_lambda_.13} parent=11 // pred_region
        _
      $region20: #{_lambda_.13} parent=11 // pred_fallthru
        _
    $region12: #{_lambda_.13} parent=5 // pred_fallthru
      _
    %p126 = scmp.lt.s32.totalorder %s11, 2
    // Predicated region
    $region21: #{_lambda_.13} parent=5 // pred_check
      %p127 = pneg %p126
    $region22: #{_lambda_.13} parent=5 // pred_check_branch
      %129 = sbr.rel (%p127) target = $region24
    $region23: #{_lambda_.13} parent=5 // pred_region
      // Predicated region
      $region25: #{_lambda_.13} parent=23 // pred_check
        %p130 = pneg %p52
      $region26: #{_lambda_.13} parent=23 // pred_check_branch
        %132 = sbr.rel (%p130) target = $region28
      $region27: #{_lambda_.13} parent=23 // pred_region
        %s133 = smul.u32 2, %s11
        %p134 = scmp.lt.s32.totalorder %s133, 3
        %s135 = scalar_select %p134, %s133, 3
        %s136 = smul.addr %s135, 4
        %s137 = scalar_lea.vmem %s1, %s136
        %s138 = smul.u32 2, %s11
      $region28: #{_lambda_.13} parent=23 // pred_fallthru
        _
    $region24: #{_lambda_.13} parent=5 // pred_fallthru
      _
    %p139 = scmp.le.s32.totalorder 1, %s11
    %p140 = scmp.lt.s32.totalorder %s11, 3
    %p141 = pnand %p139, %p140
    %p142 = pneg %p141
    // Predicated region
    $region29: #{_lambda_.13} parent=5 // pred_check
      _
    $region30: #{_lambda_.13} parent=5 // pred_check_branch
      %144 = sbr.rel (%p141) target = $region32
    $region31: #{_lambda_.13} parent=5 // pred_region
      %s145 = ssub.s32 %s11, 1
      %p146 = pneg %p32
      %p147 = pneg %p29
      %s148 = smul.u32 2, %s16
      %p149 = scmp.lt.s32.totalorder %s148, 3
      %s150 = scalar_select %p149, %s148, 3
      %s151 = smul.addr %s150, 4
      %s152 = scalar_lea.vmem %s1, %s151
      %p153 = pneg %p58
      %p154 = pneg %p55
      %p155 = pneg %p79
      %p156 = pneg %p76
      %p157 = pneg %p105
      %p158 = pneg %p102
      %s159 = smul.u32 2, %s16
      %p160 = scmp.lt.s32.totalorder %s159, 3
      %s161 = scalar_select %p160, %s159, 3
      %s162 = scalar_lea.vmem %s3, %s161
      %s163 = smul.u32 2, %s16
      %p164 = scmp.lt.s32.totalorder %s163, 3
      %s165 = scalar_select %p164, %s163, 3
      %s166 = smul.addr %s165, 4
      %s167 = scalar_lea.vmem %s1, %s166
      %s168 = smul.u32 2, %s16
      %s169 = smul.u32 2, %s16
      %p170 = scmp.lt.s32.totalorder %s169, 3
      %s171 = scalar_select %p170, %s169, 3
      %s172 = scalar_lea.vmem %s3, %s171
      %s173 = smul.u32 2, %s16
      %v175 = vld [vmem:[%s0] sm:$0x1]
      %v176 = vld [vmem:[%s167] sm:$0xff]
      %v177 = vld [vmem:[#allocation2] sm:$0x1]
      %179 = vset.pattern.permute.xlu0 0
      %180 = vperm.xlu0 %179, %v177
      %v181 = vpop.permute.xlu0 %180
      %v183 = vlaneseq
      %v184 = vshrl.u32 %v183, 7
      %v185 = vsub.s32 0, %v184
      %v186 = vrot.slane %v181, %v185
      %v188 = vunpack.c.l.b16 %v176
      %v189 = vunpack.c.h.b16 %v176
      %v190 = vpack.c.b16 %v188, %v188
      %v191 = vpack.c.b16 %v189, %v189
      %vm192 = vcmask 56320
      %v194 = vsel %vm192, %v175, 0
      %vm196 = vcmask 1042432
      %vm197 = vcmask 1043456
      %v198 = vsel %vm196, 4294967295, 65535
      %v199 = vsel %vm197, %v198, 0
      %v201 = vand.u32 %v190, %v199
      %v204 = vand.u32 %v191, %v199
      %206 = vmatprep.subr.bf16.mxu0 %v204
      %207 = vmatpush1.bf16.msra.mxu0 %v201
      %208 = vmatprep.subr.bf16.mxu0 0
      %209 = vmatpush1.bf16.msra.mxu0 0
      %210 = vmatprep.subr.bf16.mxu0 0
      %211 = vmatpush1.bf16.msra.mxu0 0
      %212 = vmatprep.subr.bf16.mxu0 0
      %213 = vmatpush1.bf16.msra.mxu0 0
      %214 = vmatprep.subr.bf16.mxu0 0
      %215 = vmatpush1.bf16.msra.mxu0 0
      %216 = vmatprep.subr.bf16.mxu0 0
      %217 = vmatpush1.bf16.msra.mxu0 0
      %218 = vmatprep.subr.bf16.mxu0 0
      %219 = vmatpush1.bf16.msra.mxu0 0
      %220 = vmatprep.subr.bf16.mxu0 0
      %221 = vmatpush1.bf16.msra.mxu0 0
      %222 = vmatprep.subr.bf16.mxu0 0
      %223 = vmatpush1.bf16.msra.mxu0 0
      %224 = vmatprep.subr.bf16.mxu0 0
      %225 = vmatpush1.bf16.msra.mxu0 0
      %226 = vmatprep.subr.bf16.mxu0 0
      %227 = vmatpush1.bf16.msra.mxu0 0
      %228 = vmatprep.subr.bf16.mxu0 0
      %229 = vmatpush1.bf16.msra.mxu0 0
      %230 = vmatprep.subr.bf16.mxu0 0
      %231 = vmatpush1.bf16.msra.mxu0 0
      %232 = vmatprep.subr.bf16.mxu0 0
      %233 = vmatpush1.bf16.msra.mxu0 0
      %234 = vmatprep.subr.bf16.mxu0 0
      %235 = vmatpush1.bf16.msra.mxu0 0
      %236 = vmatprep.subr.bf16.mxu0 0
      %237 = vmatpush1.bf16.msra.mxu0 0
      %238 = vmatprep.mubr.bf16.mxu0 0
      %239 = vmatmul.mubr.bf16.gmra.mrb[0].mxu0 %v194
      %v240 = vpop.f32.mrb[0].mxu0
      %v241 = vadd.f32 %v186, %v240
      %v242 = vpop.f32.mrb[0].mxu0
      %v243 = vadd.f32 %v186, %v242
      %v244 = vpop.f32.mrb[0].mxu0
      %v245 = vpop.f32.mrb[0].mxu0
      %246 = vdwg.mxu0
      %v247 = vxor.u32 %v241, 2147483648
      %v248 = vxor.u32 %v243, 2147483648
      %v249 = vmul.f32 %v247, 1.442695
      %v250 = vpow.pop %v249
      %v251 = vmul.f32 %v248, 1.442695
      %v252 = vpow.pop %v251
      %v253 = vadd.f32 %v250, 1.0
      %v254 = vadd.f32 %v252, 1.0
      %v255 = vrcp.pop %v253
      %v256 = vmul.f32 1.0, %v255
      %v257 = vrcp.pop %v254
      %v258 = vmul.f32 1.0, %v257
      %v259 = vmul.f32 %v256, 256.0
      %v260 = vmul.f32 %v258, 256.0
      %v263 = vcombine.low %v259, %v260
      %v265 = vunpack.c.l.s4 1966171168
      %v266 = vunpack.c.0.s8 %v265
      %v267 = vlaneseq
      %v268 = vshrl.u32 %v267, 7
      %v269 = vsub.s32 %v266, %v268
      %v270 = vrot.slane %v263, %v269
      %v272 = vunpack.c.l.s4 1966171168
      %v273 = vunpack.c.0.s8 %v272
      %v274 = vlaneseq
      %v275 = vshrl.u32 %v274, 7
      %v276 = vsub.s32 %v273, %v275
      %v277 = vrot.slane %v270, %v276
      %v279 = vlaneseq
      %vm280 = vcmp.ge.s32.totalorder %v279, 0
      %vm281 = vcmp.lt.s32.totalorder %v279, 256
      %vm282 = vmand %vm280, %vm281
      %283 = vst.msk [vmem:[%s172] sm:$0x3] %vm282, %v277
      %s284 = smul.u32 2, %s16
      %p285 = scmp.lt.s32.totalorder %s284, 3
      %s286 = scalar_select %p285, %s284, 3
      %s287 = scalar_lea.vmem %s3, %s286
      // Predicated region
      $region33: #{_lambda_.13} parent=31 // pred_check
        %p288 = pneg %p102
      $region34: #{_lambda_.13} parent=31 // pred_check_branch
        %290 = sbr.rel (%p288) target = $region36
      $region35: #{_lambda_.13} parent=31 // pred_region
        %s291 = smul.u32 2, %s16
      $region36: #{_lambda_.13} parent=31 // pred_fallthru
        _
    $region32: #{_lambda_.13} parent=5 // pred_fallthru
      _
    %p292 = scmp.le.s32.totalorder 2, %s11
    // Predicated region
    $region37: #{_lambda_.13} parent=5 // pred_check
      %p293 = pneg %p292
    $region38: #{_lambda_.13} parent=5 // pred_check_branch
      %295 = sbr.rel (%p293) target = $region40
    $region39: #{_lambda_.13} parent=5 // pred_region
      %s296 = ssub.s32 %s11, 2
      // Predicated region
      $region41: #{_lambda_.13} parent=39 // pred_check
        %p297 = pneg %p108
      $region42: #{_lambda_.13} parent=39 // pred_check_branch
        %299 = sbr.rel (%p297) target = $region44
      $region43: #{_lambda_.13} parent=39 // pred_region
        %s300 = smul.u32 2, %s17
        %p301 = scmp.lt.s32.totalorder %s300, 3
        %s302 = scalar_select %p301, %s300, 3
        %s303 = scalar_lea.vmem %s3, %s302
      $region44: #{_lambda_.13} parent=39 // pred_fallthru
        _
    $region40: #{_lambda_.13} parent=5 // pred_fallthru
      _
  $region6: #{_lambda_.13} parent=0 // loop_footer
    %s15 = sadd.s32 1, %s11
  $region7: #{_lambda_.13} parent=0 // loop_footer_branch
    %10 = sbr.rel target = $region3
  $region8: #{_lambda_.13} parent=0 // loop_exit
    _

</llo_original>
